<compile_context>
chip_gen: v5e
topology: v5e:2x2
jax: 0.10.0
libtpu: 0.0.40
codegen_flags: <defaults>
</compile_context>

<pallas_src>
import functools

import jax
import jax.numpy as jnp
from jax import lax
from jax.experimental import pallas as pl
from jax.experimental.pallas import tpu as pltpu


# ---------------------------------------------------------------------------
# Hoisted (time-parallel) part: gate inputs from x, bias folded in.
# ---------------------------------------------------------------------------
def _gate_inputs(x, w_ih, bias, weight_dtype):
    """x:(T,B,I), w_ih:(4H,I), bias:(4H,) -> f32 gate pre-activations (T,4,B,H)."""
    T, B, I = x.shape
    H = w_ih.shape[0] // 4
    xw = jnp.dot(
        x.reshape(T * B, I).astype(weight_dtype),
        jnp.transpose(w_ih).astype(weight_dtype),
        preferred_element_type=jnp.float32,
    )                                                  # (T*B, 4H), f32
    xw = xw + bias.astype(jnp.float32)[None, :]
    # PyTorch gate order (i, f, g, o) occupies contiguous H-blocks of the 4H
    # axis, so reshape splits it gate-major; transpose -> (T, 4, B, H).
    return xw.reshape(T, B, 4, H).transpose(0, 2, 1, 3)


def _recurrent_weights(w_hh, weight_dtype):
    """w_hh:(4H,H) -> (4,H,H) where [k] = W_hh_k^T (ready for h @ W)."""
    H = w_hh.shape[1]
    return jnp.transpose(w_hh.reshape(4, H, H), (0, 2, 1)).astype(weight_dtype)


# ---------------------------------------------------------------------------
# Sequential recurrence kernel: `time_chunk` reversed steps per grid step.
# ---------------------------------------------------------------------------
def _bwd_lstm_kernel(xg_ref, whh_hbm, out_ref, whh_vmem, h_sc, c_sc, w_sem,
                     *, time_chunk):
    """xg_ref  : (Tc, 4, B, H) f32   precomputed x-projection (+bias), one chunk
    whh_hbm : (4, H, H)        recurrent weights, left in HBM (pl.ANY)
    out_ref : (Tc, B, H)       hidden-state outputs for this chunk
    whh_vmem: (4, H, H)        VMEM scratch, filled once at grid step 0
    h_sc,c_sc: (B, H) f32      recurrent state, persists across grid steps
    w_sem   : DMA semaphore for the one-time weight copy
    """
    g = pl.program_id(0)

    @pl.when(g == 0)
    def _init():
        h_sc[...] = jnp.zeros_like(h_sc)
        c_sc[...] = jnp.zeros_like(c_sc)
        cp = pltpu.make_async_copy(whh_hbm, whh_vmem, w_sem)
        cp.start()
        cp.wait()

    w_dtype = whh_vmem.dtype

    def step(s, carry):
        h, c = carry                              # f32 (B, H)
        lt = time_chunk - 1 - s                   # walk the chunk backwards
        xg_t = xg_ref[lt]                         # (4, B, H) f32
        hw = h.astype(w_dtype)                    # bf16 operand for the MXU
        pre = [
            xg_t[k] + jnp.dot(hw, whh_vmem[k],
                              preferred_element_type=jnp.float32)
            for k in range(4)
        ]
        i_g = jax.nn.sigmoid(pre[0])
        f_g = jax.nn.sigmoid(pre[1])
        g_g = jnp.tanh(pre[2])
        o_g = jax.nn.sigmoid(pre[3])
        c_new = f_g * c + i_g * g_g
        h_new = o_g * jnp.tanh(c_new)
        out_ref[lt] = h_new.astype(out_ref.dtype)
        return h_new, c_new

    h_f, c_f = lax.fori_loop(0, time_chunk, step,
                             (h_sc[...], c_sc[...]), unroll=True)
    h_sc[...] = h_f
    c_sc[...] = c_f


def _backward_lstm_layer(xg, whh_g, out_dtype, *, time_chunk):
    """xg:(Tpad,4,B,H) f32, whh_g:(4,H,H) -> (Tpad, B, H) in out_dtype."""
    Tpad, _, B, H = xg.shape
    assert Tpad % time_chunk == 0
    G = Tpad // time_chunk

    kernel = functools.partial(_bwd_lstm_kernel, time_chunk=time_chunk)

    # VMEM budget estimate (double-buffered xg/out blocks + resident weights
    # + state); floor 32 MiB, cap 64 MiB so it is valid on v5e/v6e/v7x alike.
    xg_blk = time_chunk * 4 * B * H * 4
    out_blk = time_chunk * B * H * jnp.dtype(out_dtype).itemsize
    whh_bytes = 4 * H * H * jnp.dtype(whh_g.dtype).itemsize
    state_bytes = 2 * B * H * 4
    est = 2 * xg_blk + 2 * out_blk + whh_bytes + state_bytes
    vmem_limit = int(min(max(2 * est + (1 << 20), 32 << 20), 64 << 20))

    return pl.pallas_call(
        kernel,
        out_shape=jax.ShapeDtypeStruct((Tpad, B, H), out_dtype),
        grid_spec=pltpu.PrefetchScalarGridSpec(
            num_scalar_prefetch=0,
            grid=(G,),
            in_specs=[
                # Time reversal folded into the index map: chunk G-1-g.
                pl.BlockSpec((time_chunk, 4, B, H),
                             lambda g: (G - 1 - g, 0, 0, 0)),
                # Recurrent weights stay in HBM; copied once inside the kernel.
                pl.BlockSpec(memory_space=pl.ANY),
            ],
            out_specs=pl.BlockSpec((time_chunk, B, H),
                                   lambda g: (G - 1 - g, 0, 0)),
            scratch_shapes=[
                pltpu.VMEM(whh_g.shape, whh_g.dtype),   # single-copy weights
                pltpu.VMEM((B, H), jnp.float32),        # h state
                pltpu.VMEM((B, H), jnp.float32),        # c state
                pltpu.SemaphoreType.DMA(()),            # weight-load semaphore
            ],
        ),
        compiler_params=pltpu.CompilerParams(
            dimension_semantics=("arbitrary",),         # sequential recurrence
            vmem_limit_bytes=vmem_limit,
        ),
    )(xg, whh_g)


# ---------------------------------------------------------------------------
# Module-level forward: flip -> stacked LSTM -> flip.
# ---------------------------------------------------------------------------
def backward_lstm_forward(x, params, *, time_chunk=8,
                          weight_dtype=jnp.bfloat16):
    """BackwardLSTM.forward.  x:(T,B,I) -> (T,B,H)."""
    out = x
    for (w_ih, w_hh, b_ih, b_hh) in params:
        T, B, _ = out.shape
        H = w_hh.shape[1]
        tc = min(time_chunk, max(T, 1))

        # Hoisted, grid-parallel x-projection with bias folded in.
        xg = _gate_inputs(out, w_ih, b_ih + b_hh, weight_dtype)   # (T,4,B,H)
        whh_g = _recurrent_weights(w_hh, weight_dtype)            # (4,H,H)

        # Pad the time axis at the FRONT to a multiple of the chunk.  Padded
        # steps are processed last (the recurrence runs T-1 -> 0), so they
        # cannot affect real outputs; their outputs are sliced off.
        G = -(-T // tc)
        pad = G * tc - T
        if pad:
            xg = jnp.concatenate(
                [jnp.zeros((pad,) + xg.shape[1:], xg.dtype), xg], axis=0)

        y = _backward_lstm_layer(xg, whh_g, out.dtype, time_chunk=tc)
        out = y[pad:] if pad else y
    return out


def init_backward_lstm_params(key, input_size, hidden_size, num_layers=1):
    """Deterministic init mirroring nn.LSTM: uniform(-1/sqrt(H), 1/sqrt(H))."""
    bound = 1.0 / (hidden_size ** 0.5)
    params = []
    for layer in range(num_layers):
        in_dim = input_size if layer == 0 else hidden_size
        key, k1, k2, k3, k4 = jax.random.split(key, 5)
        w_ih = jax.random.uniform(k1, (4 * hidden_size, in_dim),
                                  jnp.float32, -bound, bound)
        w_hh = jax.random.uniform(k2, (4 * hidden_size, hidden_size),
                                  jnp.float32, -bound, bound)
        b_ih = jax.random.uniform(k3, (4 * hidden_size,),
                                  jnp.float32, -bound, bound)
        b_hh = jax.random.uniform(k4, (4 * hidden_size,),
                                  jnp.float32, -bound, bound)
        params.append((w_ih, w_hh, b_ih, b_hh))
    return params


def backward_lstm_reference(x, params, weight_dtype=jnp.bfloat16):
    """Pure-JAX reference (lax.scan) mirroring the kernel's mixed precision."""
    out = x
    for (w_ih, w_hh, b_ih, b_hh) in params:
        T, B, _ = out.shape
        H = w_hh.shape[1]
        xg = _gate_inputs(out, w_ih, b_ih + b_hh, weight_dtype)   # (T,4,B,H)
        whh_g = _recurrent_weights(w_hh, weight_dtype)            # (4,H,H)
        xg_rev = jnp.flip(xg, axis=0)

        def step(carry, xg_t):
            h, c = carry
            hw = h.astype(weight_dtype)
            pre = [xg_t[k] + jnp.dot(hw, whh_g[k],
                                     preferred_element_type=jnp.float32)
                   for k in range(4)]
            i_g = jax.nn.sigmoid(pre[0])
            f_g = jax.nn.sigmoid(pre[1])
            g_g = jnp.tanh(pre[2])
            o_g = jax.nn.sigmoid(pre[3])
            c = f_g * c + i_g * g_g
            h = o_g * jnp.tanh(c)
            return (h, c), h

        init = (jnp.zeros((B, H), jnp.float32), jnp.zeros((B, H), jnp.float32))
        _, ys = lax.scan(step, init, xg_rev)
        out = jnp.flip(ys, axis=0).astype(out.dtype)
    return out


if __name__ == "__main__":
    # Small shapes consistent with (seq_len, batch, input_size).
    # T=9 with time_chunk=4 exercises both the cross-grid-step state carry
    # and the front-padding path; num_layers=2 exercises stacking.
    T, B, I, H = 9, 2, 4, 32
    num_layers = 2

    key = jax.random.PRNGKey(0)
    kx, kp = jax.random.split(key)
    x = jax.random.normal(kx, (T, B, I), dtype=jnp.float32)
    params = init_backward_lstm_params(kp, I, H, num_layers)

    fwd = jax.jit(functools.partial(backward_lstm_forward, time_chunk=4))
    out = jax.block_until_ready(fwd(x, tuple(params)))

    ref = jax.block_until_ready(backward_lstm_reference(x, params))
    assert out.shape == (T, B, H)
    max_err = float(jnp.max(jnp.abs(out - ref)))
    assert jnp.allclose(out, ref, atol=2e-3, rtol=2e-3), (
        f"mismatch vs reference, max abs err = {max_err}")

    print("KERNEL_OK")
</pallas_src>

<mosaic_0001>
module attributes {stable_mosaic.version = 11 : i64} {
  func.func @_bwd_lstm_kernel(%arg0: i32, %arg1: memref<4x4x2x32xf32, #tpu.memory_space<vmem>>, %arg2: memref<4x32x32xbf16, #tpu.memory_space<any>>, %arg3: memref<4x2x32xf32, #tpu.memory_space<vmem>>, %arg4: memref<4x32x32xbf16, #tpu.memory_space<vmem>>, %arg5: memref<2x32xf32, #tpu.memory_space<vmem>>, %arg6: memref<2x32xf32, #tpu.memory_space<vmem>>, %arg7: memref<!tpu.dma_semaphore, #tpu.memory_space<semaphore_mem>>) attributes {dimension_semantics = [#tpu.dimension_semantics<arbitrary>], iteration_bounds = array<i64: 3>, scalar_prefetch = 0 : i64, scratch_operands = 4 : i64, tpu.core_type = #tpu.core_type<tc>, window_params = [{transform_indices = @transform_0, window_bounds = array<i64: 4, 4, 2, 32>}, {}, {transform_indices = @transform_2, window_bounds = array<i64: 4, 2, 32>}]} {
    %c0_i32 = arith.constant 0 : i32
    %0 = arith.cmpi eq, %arg0, %c0_i32 : i32
    %1 = arith.extui %0 : i1 to i32
    %c0_i32_0 = arith.constant 0 : i32
    %2 = arith.cmpi ne, %1, %c0_i32_0 : i32
    scf.if %2 {
      %cst_105 = arith.constant 0.000000e+00 : f32
      %223 = vector.broadcast %cst_105 : f32 to vector<2x32xf32>
      %c0_106 = arith.constant 0 : index
      %c0_107 = arith.constant 0 : index
      %224 = vector.load %arg5[%c0_106, %c0_107] : memref<2x32xf32, #tpu.memory_space<vmem>>, vector<2x32xf32>
      tpu.vector_store %arg5[%c0_106, %c0_107], %223 {strides = array<i32>} : memref<2x32xf32, #tpu.memory_space<vmem>>, vector<2x32xf32>,
      %cst_108 = arith.constant 0.000000e+00 : f32
      %225 = vector.broadcast %cst_108 : f32 to vector<2x32xf32>
      %c0_109 = arith.constant 0 : index
      %c0_110 = arith.constant 0 : index
      %226 = vector.load %arg6[%c0_109, %c0_110] : memref<2x32xf32, #tpu.memory_space<vmem>>, vector<2x32xf32>
      tpu.vector_store %arg6[%c0_109, %c0_110], %225 {strides = array<i32>} : memref<2x32xf32, #tpu.memory_space<vmem>>, vector<2x32xf32>,
      tpu.enqueue_dma source(%arg2 : memref<4x32x32xbf16, #tpu.memory_space<any>>) target(%arg4 : memref<4x32x32xbf16, #tpu.memory_space<vmem>>) target_semaphore(%arg7 : memref<!tpu.dma_semaphore, #tpu.memory_space<semaphore_mem>>)
      tpu.wait_dma2 semaphore(%arg7 : memref<!tpu.dma_semaphore, #tpu.memory_space<semaphore_mem>>) src(%arg2 : memref<4x32x32xbf16, #tpu.memory_space<any>>) dst(%arg4 : memref<4x32x32xbf16, #tpu.memory_space<vmem>>)
    } else {
    }
    %c0 = arith.constant 0 : index
    %c0_1 = arith.constant 0 : index
    %3 = vector.load %arg5[%c0, %c0_1] : memref<2x32xf32, #tpu.memory_space<vmem>>, vector<2x32xf32>
    %c0_2 = arith.constant 0 : index
    %c0_3 = arith.constant 0 : index
    %4 = vector.load %arg6[%c0_2, %c0_3] : memref<2x32xf32, #tpu.memory_space<vmem>>, vector<2x32xf32>
    %c0_i32_4 = arith.constant 0 : i32
    %c3_i32 = arith.constant 3 : i32
    %5 = arith.subi %c3_i32, %c0_i32_4 : i32
    %6 = arith.index_cast %5 : i32 to index
    %c0_5 = arith.constant 0 : index
    %c0_6 = arith.constant 0 : index
    %c0_7 = arith.constant 0 : index
    %7 = vector.load %arg1[%6, %c0_5, %c0_6, %c0_7] : memref<4x4x2x32xf32, #tpu.memory_space<vmem>>, vector<1x4x2x32xf32>
    %8 = vector.shape_cast %7 : vector<1x4x2x32xf32> to vector<4x2x32xf32>
    %9 = arith.truncf %3 : vector<2x32xf32> to vector<2x32xbf16>
    %10 = vector.extract_strided_slice %8 {offsets = [0, 0, 0], sizes = [1, 2, 32], strides = [1, 1, 1]} : vector<4x2x32xf32> to vector<1x2x32xf32>
    %11 = vector.shape_cast %10 : vector<1x2x32xf32> to vector<2x32xf32>
    %c0_8 = arith.constant 0 : index
    %c0_9 = arith.constant 0 : index
    %c0_10 = arith.constant 0 : index
    %12 = vector.load %arg4[%c0_8, %c0_9, %c0_10] : memref<4x32x32xbf16, #tpu.memory_space<vmem>>, vector<1x32x32xbf16>
    %13 = vector.shape_cast %12 : vector<1x32x32xbf16> to vector<32x32xbf16>
    %cst = arith.constant dense<0.000000e+00> : vector<2x32xf32>
    %14 = tpu.matmul %9, %13, %cst {dimension_numbers = #tpu.dot_dimension_numbers<[1], [0], [0], [1], [0, 0, 1, 1], [], []>} : vector<2x32xbf16>, vector<32x32xbf16>, vector<2x32xf32> -> vector<2x32xf32>
    %15 = arith.addf %11, %14 : vector<2x32xf32>
    %16 = vector.extract_strided_slice %8 {offsets = [1, 0, 0], sizes = [1, 2, 32], strides = [1, 1, 1]} : vector<4x2x32xf32> to vector<1x2x32xf32>
    %17 = vector.shape_cast %16 : vector<1x2x32xf32> to vector<2x32xf32>
    %c1 = arith.constant 1 : index
    %c0_11 = arith.constant 0 : index
    %c0_12 = arith.constant 0 : index
    %18 = vector.load %arg4[%c1, %c0_11, %c0_12] : memref<4x32x32xbf16, #tpu.memory_space<vmem>>, vector<1x32x32xbf16>
    %19 = vector.shape_cast %18 : vector<1x32x32xbf16> to vector<32x32xbf16>
    %cst_13 = arith.constant dense<0.000000e+00> : vector<2x32xf32>
    %20 = tpu.matmul %9, %19, %cst_13 {dimension_numbers = #tpu.dot_dimension_numbers<[1], [0], [0], [1], [0, 0, 1, 1], [], []>} : vector<2x32xbf16>, vector<32x32xbf16>, vector<2x32xf32> -> vector<2x32xf32>
    %21 = arith.addf %17, %20 : vector<2x32xf32>
    %22 = vector.extract_strided_slice %8 {offsets = [2, 0, 0], sizes = [1, 2, 32], strides = [1, 1, 1]} : vector<4x2x32xf32> to vector<1x2x32xf32>
    %23 = vector.shape_cast %22 : vector<1x2x32xf32> to vector<2x32xf32>
    %c2 = arith.constant 2 : index
    %c0_14 = arith.constant 0 : index
    %c0_15 = arith.constant 0 : index
    %24 = vector.load %arg4[%c2, %c0_14, %c0_15] : memref<4x32x32xbf16, #tpu.memory_space<vmem>>, vector<1x32x32xbf16>
    %25 = vector.shape_cast %24 : vector<1x32x32xbf16> to vector<32x32xbf16>
    %cst_16 = arith.constant dense<0.000000e+00> : vector<2x32xf32>
    %26 = tpu.matmul %9, %25, %cst_16 {dimension_numbers = #tpu.dot_dimension_numbers<[1], [0], [0], [1], [0, 0, 1, 1], [], []>} : vector<2x32xbf16>, vector<32x32xbf16>, vector<2x32xf32> -> vector<2x32xf32>
    %27 = arith.addf %23, %26 : vector<2x32xf32>
    %28 = vector.extract_strided_slice %8 {offsets = [3, 0, 0], sizes = [1, 2, 32], strides = [1, 1, 1]} : vector<4x2x32xf32> to vector<1x2x32xf32>
    %29 = vector.shape_cast %28 : vector<1x2x32xf32> to vector<2x32xf32>
    %c3 = arith.constant 3 : index
    %c0_17 = arith.constant 0 : index
    %c0_18 = arith.constant 0 : index
    %30 = vector.load %arg4[%c3, %c0_17, %c0_18] : memref<4x32x32xbf16, #tpu.memory_space<vmem>>, vector<1x32x32xbf16>
    %31 = vector.shape_cast %30 : vector<1x32x32xbf16> to vector<32x32xbf16>
    %cst_19 = arith.constant dense<0.000000e+00> : vector<2x32xf32>
    %32 = tpu.matmul %9, %31, %cst_19 {dimension_numbers = #tpu.dot_dimension_numbers<[1], [0], [0], [1], [0, 0, 1, 1], [], []>} : vector<2x32xbf16>, vector<32x32xbf16>, vector<2x32xf32> -> vector<2x32xf32>
    %33 = arith.addf %29, %32 : vector<2x32xf32>
    %34 = arith.negf %15 : vector<2x32xf32>
    %35 = math.exp %34 : vector<2x32xf32>
    %cst_20 = arith.constant 1.000000e+00 : f32
    %36 = vector.broadcast %cst_20 : f32 to vector<2x32xf32>
    %37 = arith.addf %36, %35 : vector<2x32xf32>
    %38 = arith.divf %36, %37 : vector<2x32xf32>
    %39 = arith.negf %21 : vector<2x32xf32>
    %40 = math.exp %39 : vector<2x32xf32>
    %cst_21 = arith.constant 1.000000e+00 : f32
    %41 = vector.broadcast %cst_21 : f32 to vector<2x32xf32>
    %42 = arith.addf %41, %40 : vector<2x32xf32>
    %43 = arith.divf %41, %42 : vector<2x32xf32>
    %44 = math.tanh %27 : vector<2x32xf32>
    %45 = arith.negf %33 : vector<2x32xf32>
    %46 = math.exp %45 : vector<2x32xf32>
    %cst_22 = arith.constant 1.000000e+00 : f32
    %47 = vector.broadcast %cst_22 : f32 to vector<2x32xf32>
    %48 = arith.addf %47, %46 : vector<2x32xf32>
    %49 = arith.divf %47, %48 : vector<2x32xf32>
    %50 = arith.mulf %43, %4 : vector<2x32xf32>
    %51 = arith.mulf %38, %44 : vector<2x32xf32>
    %52 = arith.addf %50, %51 : vector<2x32xf32>
    %53 = math.tanh %52 : vector<2x32xf32>
    %54 = arith.mulf %49, %53 : vector<2x32xf32>
    %55 = arith.index_cast %5 : i32 to index
    %c0_23 = arith.constant 0 : index
    %c0_24 = arith.constant 0 : index
    %56 = vector.load %arg3[%55, %c0_23, %c0_24] : memref<4x2x32xf32, #tpu.memory_space<vmem>>, vector<1x2x32xf32>
    %57 = vector.shape_cast %56 : vector<1x2x32xf32> to vector<2x32xf32>
    %58 = vector.shape_cast %54 : vector<2x32xf32> to vector<1x2x32xf32>
    tpu.vector_store %arg3[%55, %c0_23, %c0_24], %58 {strides = array<i32>} : memref<4x2x32xf32, #tpu.memory_space<vmem>>, vector<1x2x32xf32>,
    %c1_i32 = arith.constant 1 : i32
    %c3_i32_25 = arith.constant 3 : i32
    %59 = arith.subi %c3_i32_25, %c1_i32 : i32
    %60 = arith.index_cast %59 : i32 to index
    %c0_26 = arith.constant 0 : index
    %c0_27 = arith.constant 0 : index
    %c0_28 = arith.constant 0 : index
    %61 = vector.load %arg1[%60, %c0_26, %c0_27, %c0_28] : memref<4x4x2x32xf32, #tpu.memory_space<vmem>>, vector<1x4x2x32xf32>
    %62 = vector.shape_cast %61 : vector<1x4x2x32xf32> to vector<4x2x32xf32>
    %63 = arith.truncf %54 : vector<2x32xf32> to vector<2x32xbf16>
    %64 = vector.extract_strided_slice %62 {offsets = [0, 0, 0], sizes = [1, 2, 32], strides = [1, 1, 1]} : vector<4x2x32xf32> to vector<1x2x32xf32>
    %65 = vector.shape_cast %64 : vector<1x2x32xf32> to vector<2x32xf32>
    %c0_29 = arith.constant 0 : index
    %c0_30 = arith.constant 0 : index
    %c0_31 = arith.constant 0 : index
    %66 = vector.load %arg4[%c0_29, %c0_30, %c0_31] : memref<4x32x32xbf16, #tpu.memory_space<vmem>>, vector<1x32x32xbf16>
    %67 = vector.shape_cast %66 : vector<1x32x32xbf16> to vector<32x32xbf16>
    %cst_32 = arith.constant dense<0.000000e+00> : vector<2x32xf32>
    %68 = tpu.matmul %63, %67, %cst_32 {dimension_numbers = #tpu.dot_dimension_numbers<[1], [0], [0], [1], [0, 0, 1, 1], [], []>} : vector<2x32xbf16>, vector<32x32xbf16>, vector<2x32xf32> -> vector<2x32xf32>
    %69 = arith.addf %65, %68 : vector<2x32xf32>
    %70 = vector.extract_strided_slice %62 {offsets = [1, 0, 0], sizes = [1, 2, 32], strides = [1, 1, 1]} : vector<4x2x32xf32> to vector<1x2x32xf32>
    %71 = vector.shape_cast %70 : vector<1x2x32xf32> to vector<2x32xf32>
    %c1_33 = arith.constant 1 : index
    %c0_34 = arith.constant 0 : index
    %c0_35 = arith.constant 0 : index
    %72 = vector.load %arg4[%c1_33, %c0_34, %c0_35] : memref<4x32x32xbf16, #tpu.memory_space<vmem>>, vector<1x32x32xbf16>
    %73 = vector.shape_cast %72 : vector<1x32x32xbf16> to vector<32x32xbf16>
    %cst_36 = arith.constant dense<0.000000e+00> : vector<2x32xf32>
    %74 = tpu.matmul %63, %73, %cst_36 {dimension_numbers = #tpu.dot_dimension_numbers<[1], [0], [0], [1], [0, 0, 1, 1], [], []>} : vector<2x32xbf16>, vector<32x32xbf16>, vector<2x32xf32> -> vector<2x32xf32>
    %75 = arith.addf %71, %74 : vector<2x32xf32>
    %76 = vector.extract_strided_slice %62 {offsets = [2, 0, 0], sizes = [1, 2, 32], strides = [1, 1, 1]} : vector<4x2x32xf32> to vector<1x2x32xf32>
    %77 = vector.shape_cast %76 : vector<1x2x32xf32> to vector<2x32xf32>
    %c2_37 = arith.constant 2 : index
    %c0_38 = arith.constant 0 : index
    %c0_39 = arith.constant 0 : index
    %78 = vector.load %arg4[%c2_37, %c0_38, %c0_39] : memref<4x32x32xbf16, #tpu.memory_space<vmem>>, vector<1x32x32xbf16>
    %79 = vector.shape_cast %78 : vector<1x32x32xbf16> to vector<32x32xbf16>
    %cst_40 = arith.constant dense<0.000000e+00> : vector<2x32xf32>
    %80 = tpu.matmul %63, %79, %cst_40 {dimension_numbers = #tpu.dot_dimension_numbers<[1], [0], [0], [1], [0, 0, 1, 1], [], []>} : vector<2x32xbf16>, vector<32x32xbf16>, vector<2x32xf32> -> vector<2x32xf32>
    %81 = arith.addf %77, %80 : vector<2x32xf32>
    %82 = vector.extract_strided_slice %62 {offsets = [3, 0, 0], sizes = [1, 2, 32], strides = [1, 1, 1]} : vector<4x2x32xf32> to vector<1x2x32xf32>
    %83 = vector.shape_cast %82 : vector<1x2x32xf32> to vector<2x32xf32>
    %c3_41 = arith.constant 3 : index
    %c0_42 = arith.constant 0 : index
    %c0_43 = arith.constant 0 : index
    %84 = vector.load %arg4[%c3_41, %c0_42, %c0_43] : memref<4x32x32xbf16, #tpu.memory_space<vmem>>, vector<1x32x32xbf16>
    %85 = vector.shape_cast %84 : vector<1x32x32xbf16> to vector<32x32xbf16>
    %cst_44 = arith.constant dense<0.000000e+00> : vector<2x32xf32>
    %86 = tpu.matmul %63, %85, %cst_44 {dimension_numbers = #tpu.dot_dimension_numbers<[1], [0], [0], [1], [0, 0, 1, 1], [], []>} : vector<2x32xbf16>, vector<32x32xbf16>, vector<2x32xf32> -> vector<2x32xf32>
    %87 = arith.addf %83, %86 : vector<2x32xf32>
    %88 = arith.negf %69 : vector<2x32xf32>
    %89 = math.exp %88 : vector<2x32xf32>
    %cst_45 = arith.constant 1.000000e+00 : f32
    %90 = vector.broadcast %cst_45 : f32 to vector<2x32xf32>
    %91 = arith.addf %90, %89 : vector<2x32xf32>
    %92 = arith.divf %90, %91 : vector<2x32xf32>
    %93 = arith.negf %75 : vector<2x32xf32>
    %94 = math.exp %93 : vector<2x32xf32>
    %cst_46 = arith.constant 1.000000e+00 : f32
    %95 = vector.broadcast %cst_46 : f32 to vector<2x32xf32>
    %96 = arith.addf %95, %94 : vector<2x32xf32>
    %97 = arith.divf %95, %96 : vector<2x32xf32>
    %98 = math.tanh %81 : vector<2x32xf32>
    %99 = arith.negf %87 : vector<2x32xf32>
    %100 = math.exp %99 : vector<2x32xf32>
    %cst_47 = arith.constant 1.000000e+00 : f32
    %101 = vector.broadcast %cst_47 : f32 to vector<2x32xf32>
    %102 = arith.addf %101, %100 : vector<2x32xf32>
    %103 = arith.divf %101, %102 : vector<2x32xf32>
    %104 = arith.mulf %97, %52 : vector<2x32xf32>
    %105 = arith.mulf %92, %98 : vector<2x32xf32>
    %106 = arith.addf %104, %105 : vector<2x32xf32>
    %107 = math.tanh %106 : vector<2x32xf32>
    %108 = arith.mulf %103, %107 : vector<2x32xf32>
    %109 = arith.index_cast %59 : i32 to index
    %c0_48 = arith.constant 0 : index
    %c0_49 = arith.constant 0 : index
    %110 = vector.load %arg3[%109, %c0_48, %c0_49] : memref<4x2x32xf32, #tpu.memory_space<vmem>>, vector<1x2x32xf32>
    %111 = vector.shape_cast %110 : vector<1x2x32xf32> to vector<2x32xf32>
    %112 = vector.shape_cast %108 : vector<2x32xf32> to vector<1x2x32xf32>
    tpu.vector_store %arg3[%109, %c0_48, %c0_49], %112 {strides = array<i32>} : memref<4x2x32xf32, #tpu.memory_space<vmem>>, vector<1x2x32xf32>,
    %c2_i32 = arith.constant 2 : i32
    %c3_i32_50 = arith.constant 3 : i32
    %113 = arith.subi %c3_i32_50, %c2_i32 : i32
    %114 = arith.index_cast %113 : i32 to index
    %c0_51 = arith.constant 0 : index
    %c0_52 = arith.constant 0 : index
    %c0_53 = arith.constant 0 : index
    %115 = vector.load %arg1[%114, %c0_51, %c0_52, %c0_53] : memref<4x4x2x32xf32, #tpu.memory_space<vmem>>, vector<1x4x2x32xf32>
    %116 = vector.shape_cast %115 : vector<1x4x2x32xf32> to vector<4x2x32xf32>
    %117 = arith.truncf %108 : vector<2x32xf32> to vector<2x32xbf16>
    %118 = vector.extract_strided_slice %116 {offsets = [0, 0, 0], sizes = [1, 2, 32], strides = [1, 1, 1]} : vector<4x2x32xf32> to vector<1x2x32xf32>
    %119 = vector.shape_cast %118 : vector<1x2x32xf32> to vector<2x32xf32>
    %c0_54 = arith.constant 0 : index
    %c0_55 = arith.constant 0 : index
    %c0_56 = arith.constant 0 : index
    %120 = vector.load %arg4[%c0_54, %c0_55, %c0_56] : memref<4x32x32xbf16, #tpu.memory_space<vmem>>, vector<1x32x32xbf16>
    %121 = vector.shape_cast %120 : vector<1x32x32xbf16> to vector<32x32xbf16>
    %cst_57 = arith.constant dense<0.000000e+00> : vector<2x32xf32>
    %122 = tpu.matmul %117, %121, %cst_57 {dimension_numbers = #tpu.dot_dimension_numbers<[1], [0], [0], [1], [0, 0, 1, 1], [], []>} : vector<2x32xbf16>, vector<32x32xbf16>, vector<2x32xf32> -> vector<2x32xf32>
    %123 = arith.addf %119, %122 : vector<2x32xf32>
    %124 = vector.extract_strided_slice %116 {offsets = [1, 0, 0], sizes = [1, 2, 32], strides = [1, 1, 1]} : vector<4x2x32xf32> to vector<1x2x32xf32>
    %125 = vector.shape_cast %124 : vector<1x2x32xf32> to vector<2x32xf32>
    %c1_58 = arith.constant 1 : index
    %c0_59 = arith.constant 0 : index
    %c0_60 = arith.constant 0 : index
    %126 = vector.load %arg4[%c1_58, %c0_59, %c0_60] : memref<4x32x32xbf16, #tpu.memory_space<vmem>>, vector<1x32x32xbf16>
    %127 = vector.shape_cast %126 : vector<1x32x32xbf16> to vector<32x32xbf16>
    %cst_61 = arith.constant dense<0.000000e+00> : vector<2x32xf32>
    %128 = tpu.matmul %117, %127, %cst_61 {dimension_numbers = #tpu.dot_dimension_numbers<[1], [0], [0], [1], [0, 0, 1, 1], [], []>} : vector<2x32xbf16>, vector<32x32xbf16>, vector<2x32xf32> -> vector<2x32xf32>
    %129 = arith.addf %125, %128 : vector<2x32xf32>
    %130 = vector.extract_strided_slice %116 {offsets = [2, 0, 0], sizes = [1, 2, 32], strides = [1, 1, 1]} : vector<4x2x32xf32> to vector<1x2x32xf32>
    %131 = vector.shape_cast %130 : vector<1x2x32xf32> to vector<2x32xf32>
    %c2_62 = arith.constant 2 : index
    %c0_63 = arith.constant 0 : index
    %c0_64 = arith.constant 0 : index
    %132 = vector.load %arg4[%c2_62, %c0_63, %c0_64] : memref<4x32x32xbf16, #tpu.memory_space<vmem>>, vector<1x32x32xbf16>
    %133 = vector.shape_cast %132 : vector<1x32x32xbf16> to vector<32x32xbf16>
    %cst_65 = arith.constant dense<0.000000e+00> : vector<2x32xf32>
    %134 = tpu.matmul %117, %133, %cst_65 {dimension_numbers = #tpu.dot_dimension_numbers<[1], [0], [0], [1], [0, 0, 1, 1], [], []>} : vector<2x32xbf16>, vector<32x32xbf16>, vector<2x32xf32> -> vector<2x32xf32>
    %135 = arith.addf %131, %134 : vector<2x32xf32>
    %136 = vector.extract_strided_slice %116 {offsets = [3, 0, 0], sizes = [1, 2, 32], strides = [1, 1, 1]} : vector<4x2x32xf32> to vector<1x2x32xf32>
    %137 = vector.shape_cast %136 : vector<1x2x32xf32> to vector<2x32xf32>
    %c3_66 = arith.constant 3 : index
    %c0_67 = arith.constant 0 : index
    %c0_68 = arith.constant 0 : index
    %138 = vector.load %arg4[%c3_66, %c0_67, %c0_68] : memref<4x32x32xbf16, #tpu.memory_space<vmem>>, vector<1x32x32xbf16>
    %139 = vector.shape_cast %138 : vector<1x32x32xbf16> to vector<32x32xbf16>
    %cst_69 = arith.constant dense<0.000000e+00> : vector<2x32xf32>
    %140 = tpu.matmul %117, %139, %cst_69 {dimension_numbers = #tpu.dot_dimension_numbers<[1], [0], [0], [1], [0, 0, 1, 1], [], []>} : vector<2x32xbf16>, vector<32x32xbf16>, vector<2x32xf32> -> vector<2x32xf32>
    %141 = arith.addf %137, %140 : vector<2x32xf32>
    %142 = arith.negf %123 : vector<2x32xf32>
    %143 = math.exp %142 : vector<2x32xf32>
    %cst_70 = arith.constant 1.000000e+00 : f32
    %144 = vector.broadcast %cst_70 : f32 to vector<2x32xf32>
    %145 = arith.addf %144, %143 : vector<2x32xf32>
    %146 = arith.divf %144, %145 : vector<2x32xf32>
    %147 = arith.negf %129 : vector<2x32xf32>
    %148 = math.exp %147 : vector<2x32xf32>
    %cst_71 = arith.constant 1.000000e+00 : f32
    %149 = vector.broadcast %cst_71 : f32 to vector<2x32xf32>
    %150 = arith.addf %149, %148 : vector<2x32xf32>
    %151 = arith.divf %149, %150 : vector<2x32xf32>
    %152 = math.tanh %135 : vector<2x32xf32>
    %153 = arith.negf %141 : vector<2x32xf32>
    %154 = math.exp %153 : vector<2x32xf32>
    %cst_72 = arith.constant 1.000000e+00 : f32
    %155 = vector.broadcast %cst_72 : f32 to vector<2x32xf32>
    %156 = arith.addf %155, %154 : vector<2x32xf32>
    %157 = arith.divf %155, %156 : vector<2x32xf32>
    %158 = arith.mulf %151, %106 : vector<2x32xf32>
    %159 = arith.mulf %146, %152 : vector<2x32xf32>
    %160 = arith.addf %158, %159 : vector<2x32xf32>
    %161 = math.tanh %160 : vector<2x32xf32>
    %162 = arith.mulf %157, %161 : vector<2x32xf32>
    %163 = arith.index_cast %113 : i32 to index
    %c0_73 = arith.constant 0 : index
    %c0_74 = arith.constant 0 : index
    %164 = vector.load %arg3[%163, %c0_73, %c0_74] : memref<4x2x32xf32, #tpu.memory_space<vmem>>, vector<1x2x32xf32>
    %165 = vector.shape_cast %164 : vector<1x2x32xf32> to vector<2x32xf32>
    %166 = vector.shape_cast %162 : vector<2x32xf32> to vector<1x2x32xf32>
    tpu.vector_store %arg3[%163, %c0_73, %c0_74], %166 {strides = array<i32>} : memref<4x2x32xf32, #tpu.memory_space<vmem>>, vector<1x2x32xf32>,
    %c3_i32_75 = arith.constant 3 : i32
    %c3_i32_76 = arith.constant 3 : i32
    %167 = arith.subi %c3_i32_76, %c3_i32_75 : i32
    %168 = arith.index_cast %167 : i32 to index
    %c0_77 = arith.constant 0 : index
    %c0_78 = arith.constant 0 : index
    %c0_79 = arith.constant 0 : index
    %169 = vector.load %arg1[%168, %c0_77, %c0_78, %c0_79] : memref<4x4x2x32xf32, #tpu.memory_space<vmem>>, vector<1x4x2x32xf32>
    %170 = vector.shape_cast %169 : vector<1x4x2x32xf32> to vector<4x2x32xf32>
    %171 = arith.truncf %162 : vector<2x32xf32> to vector<2x32xbf16>
    %172 = vector.extract_strided_slice %170 {offsets = [0, 0, 0], sizes = [1, 2, 32], strides = [1, 1, 1]} : vector<4x2x32xf32> to vector<1x2x32xf32>
    %173 = vector.shape_cast %172 : vector<1x2x32xf32> to vector<2x32xf32>
    %c0_80 = arith.constant 0 : index
    %c0_81 = arith.constant 0 : index
    %c0_82 = arith.constant 0 : index
    %174 = vector.load %arg4[%c0_80, %c0_81, %c0_82] : memref<4x32x32xbf16, #tpu.memory_space<vmem>>, vector<1x32x32xbf16>
    %175 = vector.shape_cast %174 : vector<1x32x32xbf16> to vector<32x32xbf16>
    %cst_83 = arith.constant dense<0.000000e+00> : vector<2x32xf32>
    %176 = tpu.matmul %171, %175, %cst_83 {dimension_numbers = #tpu.dot_dimension_numbers<[1], [0], [0], [1], [0, 0, 1, 1], [], []>} : vector<2x32xbf16>, vector<32x32xbf16>, vector<2x32xf32> -> vector<2x32xf32>
    %177 = arith.addf %173, %176 : vector<2x32xf32>
    %178 = vector.extract_strided_slice %170 {offsets = [1, 0, 0], sizes = [1, 2, 32], strides = [1, 1, 1]} : vector<4x2x32xf32> to vector<1x2x32xf32>
    %179 = vector.shape_cast %178 : vector<1x2x32xf32> to vector<2x32xf32>
    %c1_84 = arith.constant 1 : index
    %c0_85 = arith.constant 0 : index
    %c0_86 = arith.constant 0 : index
    %180 = vector.load %arg4[%c1_84, %c0_85, %c0_86] : memref<4x32x32xbf16, #tpu.memory_space<vmem>>, vector<1x32x32xbf16>
    %181 = vector.shape_cast %180 : vector<1x32x32xbf16> to vector<32x32xbf16>
    %cst_87 = arith.constant dense<0.000000e+00> : vector<2x32xf32>
    %182 = tpu.matmul %171, %181, %cst_87 {dimension_numbers = #tpu.dot_dimension_numbers<[1], [0], [0], [1], [0, 0, 1, 1], [], []>} : vector<2x32xbf16>, vector<32x32xbf16>, vector<2x32xf32> -> vector<2x32xf32>
    %183 = arith.addf %179, %182 : vector<2x32xf32>
    %184 = vector.extract_strided_slice %170 {offsets = [2, 0, 0], sizes = [1, 2, 32], strides = [1, 1, 1]} : vector<4x2x32xf32> to vector<1x2x32xf32>
    %185 = vector.shape_cast %184 : vector<1x2x32xf32> to vector<2x32xf32>
    %c2_88 = arith.constant 2 : index
    %c0_89 = arith.constant 0 : index
    %c0_90 = arith.constant 0 : index
    %186 = vector.load %arg4[%c2_88, %c0_89, %c0_90] : memref<4x32x32xbf16, #tpu.memory_space<vmem>>, vector<1x32x32xbf16>
    %187 = vector.shape_cast %186 : vector<1x32x32xbf16> to vector<32x32xbf16>
    %cst_91 = arith.constant dense<0.000000e+00> : vector<2x32xf32>
    %188 = tpu.matmul %171, %187, %cst_91 {dimension_numbers = #tpu.dot_dimension_numbers<[1], [0], [0], [1], [0, 0, 1, 1], [], []>} : vector<2x32xbf16>, vector<32x32xbf16>, vector<2x32xf32> -> vector<2x32xf32>
    %189 = arith.addf %185, %188 : vector<2x32xf32>
    %190 = vector.extract_strided_slice %170 {offsets = [3, 0, 0], sizes = [1, 2, 32], strides = [1, 1, 1]} : vector<4x2x32xf32> to vector<1x2x32xf32>
    %191 = vector.shape_cast %190 : vector<1x2x32xf32> to vector<2x32xf32>
    %c3_92 = arith.constant 3 : index
    %c0_93 = arith.constant 0 : index
    %c0_94 = arith.constant 0 : index
    %192 = vector.load %arg4[%c3_92, %c0_93, %c0_94] : memref<4x32x32xbf16, #tpu.memory_space<vmem>>, vector<1x32x32xbf16>
    %193 = vector.shape_cast %192 : vector<1x32x32xbf16> to vector<32x32xbf16>
    %cst_95 = arith.constant dense<0.000000e+00> : vector<2x32xf32>
    %194 = tpu.matmul %171, %193, %cst_95 {dimension_numbers = #tpu.dot_dimension_numbers<[1], [0], [0], [1], [0, 0, 1, 1], [], []>} : vector<2x32xbf16>, vector<32x32xbf16>, vector<2x32xf32> -> vector<2x32xf32>
    %195 = arith.addf %191, %194 : vector<2x32xf32>
    %196 = arith.negf %177 : vector<2x32xf32>
    %197 = math.exp %196 : vector<2x32xf32>
    %cst_96 = arith.constant 1.000000e+00 : f32
    %198 = vector.broadcast %cst_96 : f32 to vector<2x32xf32>
    %199 = arith.addf %198, %197 : vector<2x32xf32>
    %200 = arith.divf %198, %199 : vector<2x32xf32>
    %201 = arith.negf %183 : vector<2x32xf32>
    %202 = math.exp %201 : vector<2x32xf32>
    %cst_97 = arith.constant 1.000000e+00 : f32
    %203 = vector.broadcast %cst_97 : f32 to vector<2x32xf32>
    %204 = arith.addf %203, %202 : vector<2x32xf32>
    %205 = arith.divf %203, %204 : vector<2x32xf32>
    %206 = math.tanh %189 : vector<2x32xf32>
    %207 = arith.negf %195 : vector<2x32xf32>
    %208 = math.exp %207 : vector<2x32xf32>
    %cst_98 = arith.constant 1.000000e+00 : f32
    %209 = vector.broadcast %cst_98 : f32 to vector<2x32xf32>
    %210 = arith.addf %209, %208 : vector<2x32xf32>
    %211 = arith.divf %209, %210 : vector<2x32xf32>
    %212 = arith.mulf %205, %160 : vector<2x32xf32>
    %213 = arith.mulf %200, %206 : vector<2x32xf32>
    %214 = arith.addf %212, %213 : vector<2x32xf32>
    %215 = math.tanh %214 : vector<2x32xf32>
    %216 = arith.mulf %211, %215 : vector<2x32xf32>
    %217 = arith.index_cast %167 : i32 to index
    %c0_99 = arith.constant 0 : index
    %c0_100 = arith.constant 0 : index
    %218 = vector.load %arg3[%217, %c0_99, %c0_100] : memref<4x2x32xf32, #tpu.memory_space<vmem>>, vector<1x2x32xf32>
    %219 = vector.shape_cast %218 : vector<1x2x32xf32> to vector<2x32xf32>
    %220 = vector.shape_cast %216 : vector<2x32xf32> to vector<1x2x32xf32>
    tpu.vector_store %arg3[%217, %c0_99, %c0_100], %220 {strides = array<i32>} : memref<4x2x32xf32, #tpu.memory_space<vmem>>, vector<1x2x32xf32>,
    %c4_i32 = arith.constant 4 : i32
    %c0_101 = arith.constant 0 : index
    %c0_102 = arith.constant 0 : index
    %221 = vector.load %arg5[%c0_101, %c0_102] : memref<2x32xf32, #tpu.memory_space<vmem>>, vector<2x32xf32>
    tpu.vector_store %arg5[%c0_101, %c0_102], %216 {strides = array<i32>} : memref<2x32xf32, #tpu.memory_space<vmem>>, vector<2x32xf32>,
    %c0_103 = arith.constant 0 : index
    %c0_104 = arith.constant 0 : index
    %222 = vector.load %arg6[%c0_103, %c0_104] : memref<2x32xf32, #tpu.memory_space<vmem>>, vector<2x32xf32>
    tpu.vector_store %arg6[%c0_103, %c0_104], %214 {strides = array<i32>} : memref<2x32xf32, #tpu.memory_space<vmem>>, vector<2x32xf32>,
    return
  }
  func.func @transform_0(%arg0: i32) -> (i32, i32, i32, i32) {
    %c2_i32 = arith.constant 2 : i32
    %0 = arith.subi %c2_i32, %arg0 : i32
    %c0_i32 = arith.constant 0 : i32
    %c0_i32_0 = arith.constant 0 : i32
    %c0_i32_1 = arith.constant 0 : i32
    %c0_i32_2 = arith.constant 0 : i32
    return %0, %c0_i32, %c0_i32_0, %c0_i32_1 : i32, i32, i32, i32
  }
  func.func @transform_2(%arg0: i32) -> (i32, i32, i32) {
    %c2_i32 = arith.constant 2 : i32
    %0 = arith.subi %c2_i32, %arg0 : i32
    %c0_i32 = arith.constant 0 : i32
    %c0_i32_0 = arith.constant 0 : i32
    %c0_i32_1 = arith.constant 0 : i32
    return %0, %c0_i32, %c0_i32_0 : i32, i32, i32
  }
}

</mosaic_0001>

<llo_original>
// kernel: backward_lstm_forward.2
$region0: #{backward_lstm_forward.2}
  #allocation0 [shape = 'u32[]', space=smem, size = 0x4, offset = 0x4, fixed_abs, tag = 'smem constant byte address 0x4 - core index']
  #allocation1 [shape = 'u32[72,128]{1,0:T(1,128)}', space=vmem, size = 0x9000, scoped, tag = 'internal scratch']
  #allocation2 [shape = 'bf16[4,32,32]{2,1,0:T(8,128)(2,1)}', space=vmem, size = 0x8000, scoped, tag = 'scratch operand']
  #allocation3 [shape = 'f32[2,32]{1,0:T(2,128)}', space=vmem, size = 0x400, scoped, tag = 'scratch operand']
  #allocation4 [shape = 'f32[2,32]{1,0:T(2,128)}', space=vmem, size = 0x400, scoped, tag = 'scratch operand']
  #allocation5 [shape = 's32[1]{0}', space=sflag, size = 0x4, scoped, tag = 'scratch operand']
  #allocation6 [shape = 's32[]', space=sflag, size = 0x4, offset = 0, fixed_abs, tag = 'sflag constant byte address 0x0 - dummy sync flag']
  %s0 = inlined_call_operand.vmem [shape: f32[12,4,2,32], index: 0, kind: input, shape index: {}]
  %s1 = inlined_call_operand.vmem [shape: bf16[4,32,32], index: 1, kind: input, shape index: {}]
  %s2 = inlined_call_operand.vmem [shape: f32[12,2,32], index: 2, kind: output, shape index: {}]
  %s3 = sld [smem:[#allocation0]]
  $region60: #{backward_lstm_forward.2} parent=0
    _
  %s5 = ssub.s32 1, %s3
  %s6 = scalar_select 0, %s5, %s3
  loop: start=0, step=1, limit=5
  $region2: #{backward_lstm_forward.2} parent=0 // loop_pre_header
    _
  $region3: #{backward_lstm_forward.2} parent=0 // loop_header
    %s8 = sphi 0, %s12
    %p9 = scmp.ge.s32.totalorder %s8, 5
    %s20 = sphi 0, %s22
    %s23 = sphi 0, %s20
    %s24 = sphi 0, %s23
    %s40 = sphi 0, %s24
    %s48 = sphi 0, %s50
    %s51 = sphi 0, %s48
    %s52 = sphi 0, %s51
    %s68 = sphi 0, %s52
  $region4: #{backward_lstm_forward.2} parent=0 // loop_header_branch
    %11 = sbr.rel (%p9) target = $region8
  $region5: #{backward_lstm_forward.2} parent=0 // loop_body
    %s13 = ssub.s32 %s8, 1
    %s14 = ssub.s32 %s8, 2
    %s15 = sadd.s32 %s8, 1
    %s16 = ssub.s32 2, %s8
    %s17 = ssub.s32 2, %s15
    %s18 = ssub.s32 %s16, %s17
    %p19 = scmp.eq.s32.totalorder %s18, 0
    %s21 = sadd.s32 %s20, 1
    %s22 = scalar_select %p19, %s20, %s21
    %p25 = pneg %p19
    %p26 = scmp.eq.s32.totalorder %s8, 2
    %p27 = por %p25, %p26
    %p28 = scmp.ne.s32.totalorder %s20, %s23
    %p29 = scmp.eq.s32.totalorder %s8, 0
    %p30 = por %p28, %p29
    %p31 = scmp.ne.s32.totalorder %s20, %s23
    %p32 = scmp.eq.s32.totalorder %s13, 2
    %p33 = por %p31, %p32
    %p34 = scmp.ne.s32.totalorder %s23, %s24
    %p35 = scmp.eq.s32.totalorder %s13, 0
    %p36 = por %p34, %p35
    %p37 = scmp.ne.s32.totalorder %s23, %s24
    %p38 = scmp.eq.s32.totalorder %s14, 2
    %p39 = por %p37, %p38
    %p41 = scmp.ne.s32.totalorder %s24, %s40
    %p42 = scmp.eq.s32.totalorder %s14, 0
    %p43 = por %p41, %p42
    %s44 = ssub.s32 2, %s8
    %s45 = ssub.s32 2, %s15
    %s46 = ssub.s32 %s44, %s45
    %p47 = scmp.eq.s32.totalorder %s46, 0
    %s49 = sadd.s32 %s48, 1
    %s50 = scalar_select %p47, %s48, %s49
    %p53 = pneg %p47
    %p54 = scmp.eq.s32.totalorder %s8, 2
    %p55 = por %p53, %p54
    %p56 = scmp.ne.s32.totalorder %s48, %s51
    %p57 = scmp.eq.s32.totalorder %s8, 0
    %p58 = por %p56, %p57
    %p59 = scmp.ne.s32.totalorder %s48, %s51
    %p60 = scmp.eq.s32.totalorder %s13, 2
    %p61 = por %p59, %p60
    %p62 = scmp.ne.s32.totalorder %s51, %s52
    %p63 = scmp.eq.s32.totalorder %s13, 0
    %p64 = por %p62, %p63
    %p65 = scmp.ne.s32.totalorder %s51, %s52
    %p66 = scmp.eq.s32.totalorder %s14, 2
    %p67 = por %p65, %p66
    %p69 = scmp.ne.s32.totalorder %s52, %s68
    %p70 = scmp.eq.s32.totalorder %s14, 0
    %p71 = por %p69, %p70
    %p72 = scmp.le.s32.totalorder 1, %s8
    %p73 = scmp.lt.s32.totalorder %s8, 4
    %p74 = pnand %p72, %p73
    %p75 = pneg %p74
    // Predicated region
    $region9: #{backward_lstm_forward.2} parent=5 // pred_check
      _
    $region10: #{backward_lstm_forward.2} parent=5 // pred_check_branch
      %77 = sbr.rel (%p74) target = $region12
    $region11: #{backward_lstm_forward.2} parent=5 // pred_region
      %s78 = ssub.s32 %s8, 1
    $region12: #{backward_lstm_forward.2} parent=5 // pred_fallthru
      _
    %p79 = scmp.lt.s32.totalorder %s8, 3
    // Predicated region
    $region13: #{backward_lstm_forward.2} parent=5 // pred_check
      %p80 = pneg %p79
    $region14: #{backward_lstm_forward.2} parent=5 // pred_check_branch
      %82 = sbr.rel (%p80) target = $region16
    $region15: #{backward_lstm_forward.2} parent=5 // pred_region
      // Predicated region
      $region17: #{backward_lstm_forward.2} parent=15 // pred_check
        %p83 = pneg %p30
      $region18: #{backward_lstm_forward.2} parent=15 // pred_check_branch
        %85 = sbr.rel (%p83) target = $region20
      $region19: #{backward_lstm_forward.2} parent=15 // pred_region
        %s86 = ssub.s32 2, %s8
        %s87 = smul.u32 4, %s86
        %p88 = scmp.lt.s32.totalorder %s87, 11
        %s89 = scalar_select %p88, %s87, 11
        %s90 = smul.addr %s89, 4
        %s91 = smul.addr %s90, 2
        %s92 = scalar_lea.vmem %s0, %s91
        %s93 = ssub.s32 2, %s8
        %s94 = smul.u32 4, %s93
      $region20: #{backward_lstm_forward.2} parent=15 // pred_fallthru
        _
    $region16: #{backward_lstm_forward.2} parent=5 // pred_fallthru
      _
    %p95 = scmp.le.s32.totalorder 1, %s8
    %p96 = scmp.lt.s32.totalorder %s8, 4
    %p97 = pnand %p95, %p96
    %p98 = pneg %p97
    // Predicated region
    $region21: #{backward_lstm_forward.2} parent=5 // pred_check
      _
    $region22: #{backward_lstm_forward.2} parent=5 // pred_check_branch
      %100 = sbr.rel (%p97) target = $region24
    $region23: #{backward_lstm_forward.2} parent=5 // pred_region
      %s101 = ssub.s32 %s8, 1
      %s102 = ssub.s32 2, %s13
      %s103 = smul.u32 4, %s102
      %p104 = scmp.lt.s32.totalorder %s103, 11
      %s105 = scalar_select %p104, %s103, 11
      %s106 = smul.addr %s105, 4
      %s107 = smul.addr %s106, 2
      %s108 = scalar_lea.vmem %s0, %s107
      %p109 = pneg %p36
      %p110 = pneg %p33
      %p111 = pneg %p64
      %p112 = pneg %p61
      %s113 = ssub.s32 2, %s13
      %s114 = smul.u32 4, %s113
      %p115 = scmp.lt.s32.totalorder %s114, 11
      %s116 = scalar_select %p115, %s114, 11
      %s117 = smul.addr %s116, 2
      %s118 = scalar_lea.vmem %s2, %s117
      %s119 = ssub.s32 2, %s13
      %s120 = smul.u32 4, %s119
      %p121 = scmp.lt.s32.totalorder %s120, 11
      %s122 = scalar_select %p121, %s120, 11
      %s123 = smul.addr %s122, 4
      %s124 = smul.addr %s123, 2
      %s125 = scalar_lea.vmem %s0, %s124
      %s126 = ssub.s32 2, %s13
      %s127 = smul.u32 4, %s126
      %s128 = ssub.s32 2, %s13
      %s129 = smul.u32 4, %s128
      %p130 = scmp.lt.s32.totalorder %s129, 11
      %s131 = scalar_select %p130, %s129, 11
      %s132 = smul.addr %s131, 2
      %s133 = scalar_lea.vmem %s2, %s132
      %s134 = ssub.s32 2, %s13
      %s135 = smul.u32 4, %s134
      %p137 = scmp.eq.s32.totalorder %s13, 0
      // Predicated region
      $region25: #{backward_lstm_forward.2} parent=23 // pred_check
        %p138 = pneg %p137
      $region26: #{backward_lstm_forward.2} parent=23 // pred_check_branch
        %140 = sbr.rel (%p138) target = $region28
      $region27: #{backward_lstm_forward.2} parent=23 // pred_region
        %vm141 = vcmask 254976
        %142 = vst.msk [vmem:[#allocation3] sm:$0x3] %vm141, 0.0
        %143 = vst.msk [vmem:[#allocation4] sm:$0x3] %vm141, 0.0
        // Predicated region
        $region29: #{backward_lstm_forward.2} parent=27 // pred_check
          _
        $region30: #{backward_lstm_forward.2} parent=27 // pred_check_branch
          %145 = sbr.rel (0) target = $region32
        $region31: #{backward_lstm_forward.2} parent=27 // pred_region
          loop: start=0, step=1, limit=1
          $region33: #{backward_lstm_forward.2} parent=31 // loop_pre_header
            _
          $region34: #{backward_lstm_forward.2} parent=31 // loop_header
            %s147 = sphi 0, %s151
            %p148 = scmp.ge.s32.totalorder %s147, 1
            %s152 = sphi %s1, %s1
            %s153 = sphi [#allocation2], [#allocation2]
          $region35: #{backward_lstm_forward.2} parent=31 // loop_header_branch
            %150 = sbr.rel (%p148) target = $region39
          $region36: #{backward_lstm_forward.2} parent=31 // loop_body
            %v154 = vld [vmem:[%s152] sm:$0xff]
            %155 = vst [vmem:[%s153] sm:$0xff] %v154
            %v156 = vld [vmem:[%s152 + $0x8] sm:$0xff]
            %157 = vst [vmem:[%s153 + $0x8] sm:$0xff] %v156
            %v158 = vld [vmem:[%s152 + $0x10] sm:$0xff]
            %159 = vst [vmem:[%s153 + $0x10] sm:$0xff] %v158
            %v160 = vld [vmem:[%s152 + $0x18] sm:$0xff]
            %161 = vst [vmem:[%s153 + $0x18] sm:$0xff] %v160
            %v162 = vld [vmem:[%s152 + $0x20] sm:$0xff]
            %163 = vst [vmem:[%s153 + $0x20] sm:$0xff] %v162
            %v164 = vld [vmem:[%s152 + $0x28] sm:$0xff]
            %165 = vst [vmem:[%s153 + $0x28] sm:$0xff] %v164
            %v166 = vld [vmem:[%s152 + $0x30] sm:$0xff]
            %167 = vst [vmem:[%s153 + $0x30] sm:$0xff] %v166
            %v168 = vld [vmem:[%s152 + $0x38] sm:$0xff]
            %169 = vst [vmem:[%s153 + $0x38] sm:$0xff] %v168
          $region37: #{backward_lstm_forward.2} parent=31 // loop_footer
            %s151 = sadd.s32 1, %s147
          $region38: #{backward_lstm_forward.2} parent=31 // loop_footer_branch
            %146 = sbr.rel target = $region34
          $region39: #{backward_lstm_forward.2} parent=31 // loop_exit
            _
        $region32: #{backward_lstm_forward.2} parent=27 // pred_fallthru
          _
        // Predicated region
        $region40: #{backward_lstm_forward.2} parent=27 // pred_check
          _
        $region41: #{backward_lstm_forward.2} parent=27 // pred_check_branch
          %171 = sbr.rel target = $region43
        $region42: #{backward_lstm_forward.2} parent=27 // pred_region
          _
        $region43: #{backward_lstm_forward.2} parent=27 // pred_fallthru
          _
        // Predicated region
        $region44: #{backward_lstm_forward.2} parent=27 // pred_check
          _
        $region45: #{backward_lstm_forward.2} parent=27 // pred_check_branch
          %174 = sbr.rel (0) target = $region47
        $region46: #{backward_lstm_forward.2} parent=27 // pred_region
          %175 = vsyncadd [#allocation5], 1024
        $region47: #{backward_lstm_forward.2} parent=27 // pred_fallthru
          _
        %s176 = smul.u32 4, 4
        %s177 = smul.u32 %s176, 4
        %s178 = smul.u32 %s177, 1
        %s179 = sshll.u32 %s178, 4
        %180 = dma.done [#allocation5], %s179
      $region28: #{backward_lstm_forward.2} parent=23 // pred_fallthru
        _
      %v181 = vld [vmem:[#allocation3] sm:$0x3]
      %v182 = vld [vmem:[#allocation4] sm:$0x3]
      %s183 = scalar_lea.vmem %s125, 24
      %v184 = vld [vmem:[%s183] sm:$0x3]
      %v185 = vld [vmem:[%s183 + $0x2] sm:$0x3]
      %v186 = vld [vmem:[%s183 + $0x4] sm:$0x3]
      %v187 = vld [vmem:[%s183 + $0x6] sm:$0x3]
      %v188 = vpack.c.bf16 %v181, %v181
      %v189 = vld [vmem:[#allocation2] sm:$0xf]
      %v190 = vld [vmem:[#allocation2 + $0x4] sm:$0xf]
      %v191 = vld [vmem:[#allocation2 + $0x8] sm:$0xf]
      %v192 = vld [vmem:[#allocation2 + $0xc] sm:$0xf]
      %v197 = vunpack.c.l.b16 %v189
      %v198 = vunpack.c.l.b16 %v190
      %v199 = vunpack.c.l.b16 %v191
      %v200 = vunpack.c.l.b16 %v192
      %v201 = vpack.c.b16 %v198, %v197
      %v202 = vpack.c.b16 %v200, %v199
      %vm205 = vcmask 261120
      %v207 = vsel %vm205, %v188, 0
      %209 = vmatpush.bf16.msra.mxu0 0
      %210 = vmatpush.bf16.msra.mxu0 0
      %211 = vmatpush.bf16.msra.mxu0 0
      %212 = vmatpush.bf16.msra.mxu0 0
      %213 = vmatpush.bf16.msra.mxu0 0
      %214 = vmatpush.bf16.msra.mxu0 0
      %215 = vmatpush.bf16.msra.mxu0 %v202
      %216 = vmatpush.bf16.msra.mxu0 %v201
      %217 = vmatmul.bf16.gmra.mxu0 %v207
      %v218 = vpop.f32.mrf.mxu0
      %v219 = vadd.f32 0.0, %v218
      %v220 = vpop.f32.mrf.mxu0
      %221 = vdwg.mxu0
      %v222 = vadd.f32 %v184, %v219
      %s223 = scalar_lea.vmem [#allocation2], 16
      %v224 = vld [vmem:[%s223] sm:$0xf]
      %v225 = vld [vmem:[%s223 + $0x4] sm:$0xf]
      %v226 = vld [vmem:[%s223 + $0x8] sm:$0xf]
      %v227 = vld [vmem:[%s223 + $0xc] sm:$0xf]
      %v232 = vunpack.c.l.b16 %v224
      %v233 = vunpack.c.l.b16 %v225
      %v234 = vunpack.c.l.b16 %v226
      %v235 = vunpack.c.l.b16 %v227
      %v236 = vpack.c.b16 %v233, %v232
      %v237 = vpack.c.b16 %v235, %v234
      %240 = vmatpush.bf16.msra.mxu0 0
      %241 = vmatpush.bf16.msra.mxu0 0
      %242 = vmatpush.bf16.msra.mxu0 0
      %243 = vmatpush.bf16.msra.mxu0 0
      %244 = vmatpush.bf16.msra.mxu0 0
      %245 = vmatpush.bf16.msra.mxu0 0
      %246 = vmatpush.bf16.msra.mxu0 %v237
      %247 = vmatpush.bf16.msra.mxu0 %v236
      %248 = vmatmul.bf16.gmra.mxu0 %v207
      %v249 = vpop.f32.mrf.mxu0
      %v250 = vadd.f32 0.0, %v249
      %v251 = vpop.f32.mrf.mxu0
      %252 = vdwg.mxu0
      %v253 = vadd.f32 %v185, %v250
      %s254 = scalar_lea.vmem [#allocation2], 32
      %v255 = vld [vmem:[%s254] sm:$0xf]
      %v256 = vld [vmem:[%s254 + $0x4] sm:$0xf]
      %v257 = vld [vmem:[%s254 + $0x8] sm:$0xf]
      %v258 = vld [vmem:[%s254 + $0xc] sm:$0xf]
      %v263 = vunpack.c.l.b16 %v255
      %v264 = vunpack.c.l.b16 %v256
      %v265 = vunpack.c.l.b16 %v257
      %v266 = vunpack.c.l.b16 %v258
      %v267 = vpack.c.b16 %v264, %v263
      %v268 = vpack.c.b16 %v266, %v265
      %271 = vmatpush.bf16.msra.mxu0 0
      %272 = vmatpush.bf16.msra.mxu0 0
      %273 = vmatpush.bf16.msra.mxu0 0
      %274 = vmatpush.bf16.msra.mxu0 0
      %275 = vmatpush.bf16.msra.mxu0 0
      %276 = vmatpush.bf16.msra.mxu0 0
      %277 = vmatpush.bf16.msra.mxu0 %v268
      %278 = vmatpush.bf16.msra.mxu0 %v267
      %279 = vmatmul.bf16.gmra.mxu0 %v207
      %v280 = vpop.f32.mrf.mxu0
      %v281 = vadd.f32 0.0, %v280
      %v282 = vpop.f32.mrf.mxu0
      %283 = vdwg.mxu0
      %v284 = vadd.f32 %v186, %v281
      %s285 = scalar_lea.vmem [#allocation2], 48
      %v286 = vld [vmem:[%s285] sm:$0xf]
      %v287 = vld [vmem:[%s285 + $0x4] sm:$0xf]
      %v288 = vld [vmem:[%s285 + $0x8] sm:$0xf]
      %v289 = vld [vmem:[%s285 + $0xc] sm:$0xf]
      %v294 = vunpack.c.l.b16 %v286
      %v295 = vunpack.c.l.b16 %v287
      %v296 = vunpack.c.l.b16 %v288
      %v297 = vunpack.c.l.b16 %v289
      %v298 = vpack.c.b16 %v295, %v294
      %v299 = vpack.c.b16 %v297, %v296
      %302 = vmatpush.bf16.msra.mxu0 0
      %303 = vmatpush.bf16.msra.mxu0 0
      %304 = vmatpush.bf16.msra.mxu0 0
      %305 = vmatpush.bf16.msra.mxu0 0
      %306 = vmatpush.bf16.msra.mxu0 0
      %307 = vmatpush.bf16.msra.mxu0 0
      %308 = vmatpush.bf16.msra.mxu0 %v299
      %309 = vmatpush.bf16.msra.mxu0 %v298
      %310 = vmatmul.bf16.gmra.mxu0 %v207
      %v311 = vpop.f32.mrf.mxu0
      %v312 = vadd.f32 0.0, %v311
      %v313 = vpop.f32.mrf.mxu0
      %314 = vdwg.mxu0
      %v315 = vadd.f32 %v187, %v312
      %v316 = vxor.u32 %v222, 2147483648
      %v317 = vmul.f32 %v316, 1.442695
      %v318 = vpow.pop %v317
      %v319 = vadd.f32 %v318, 1.0
      %v320 = vrcp.pop %v319
      %v321 = vmul.f32 %v319, %v320
      %v322 = vsub.f32 1.0, %v321
      %v323 = vmul.f32 %v320, %v322
      %v324 = vadd.f32 %v320, %v323
      %vm325 = vweird.f32 %v319
      %vm326 = vweird.f32 %v320
      %vm327 = vmor %vm325, %vm326
      %v328 = vsel %vm327, %v320, %v324
      %v329 = vand.u32 2147483647, %v319
      %vm330 = vcmp.eq.f32.partialorder %v329, 8.507059e+37
      %v331 = vand.u32 %v319, 2147483648
      %v332 = vor.u32 1.1754944e-38, %v331
      %v333 = vsel %vm330, %v332, %v328
      %v334 = vmul.f32 1.0, %v333
      %v335 = vxor.u32 %v253, 2147483648
      %v336 = vmul.f32 %v335, 1.442695
      %v337 = vpow.pop %v336
      %v338 = vadd.f32 %v337, 1.0
      %v339 = vrcp.pop %v338
      %v340 = vmul.f32 %v338, %v339
      %v341 = vsub.f32 1.0, %v340
      %v342 = vmul.f32 %v339, %v341
      %v343 = vadd.f32 %v339, %v342
      %vm344 = vweird.f32 %v338
      %vm345 = vweird.f32 %v339
      %vm346 = vmor %vm344, %vm345
      %v347 = vsel %vm346, %v339, %v343
      %v348 = vand.u32 2147483647, %v338
      %vm349 = vcmp.eq.f32.partialorder %v348, 8.507059e+37
      %v350 = vand.u32 %v338, 2147483648
      %v351 = vor.u32 1.1754944e-38, %v350
      %v352 = vsel %vm349, %v351, %v347
      %v353 = vmul.f32 1.0, %v352
      %v354 = vtanh.pop %v284
      %v355 = vxor.u32 %v315, 2147483648
      %v356 = vmul.f32 %v355, 1.442695
      %v357 = vpow.pop %v356
      %v358 = vadd.f32 %v357, 1.0
      %v359 = vrcp.pop %v358
      %v360 = vmul.f32 %v358, %v359
      %v361 = vsub.f32 1.0, %v360
      %v362 = vmul.f32 %v359, %v361
      %v363 = vadd.f32 %v359, %v362
      %vm364 = vweird.f32 %v358
      %vm365 = vweird.f32 %v359
      %vm366 = vmor %vm364, %vm365
      %v367 = vsel %vm366, %v359, %v363
      %v368 = vand.u32 2147483647, %v358
      %vm369 = vcmp.eq.f32.partialorder %v368, 8.507059e+37
      %v370 = vand.u32 %v358, 2147483648
      %v371 = vor.u32 1.1754944e-38, %v370
      %v372 = vsel %vm369, %v371, %v367
      %v373 = vmul.f32 1.0, %v372
      %v374 = vmul.f32 %v353, %v182
      %v375 = vmul.f32 %v334, %v354
      %v376 = vadd.f32 %v374, %v375
      %v377 = vtanh.pop %v376
      %v378 = vmul.f32 %v373, %v377
      %s379 = scalar_lea.vmem %s133, 6
      %vm380 = vcmask 254976
      %381 = vst.msk [vmem:[%s379] sm:$0x3] %vm380, %v378
      %s382 = scalar_lea.vmem %s125, 16
      %v383 = vld [vmem:[%s382] sm:$0x3]
      %v384 = vld [vmem:[%s382 + $0x2] sm:$0x3]
      %v385 = vld [vmem:[%s382 + $0x4] sm:$0x3]
      %v386 = vld [vmem:[%s382 + $0x6] sm:$0x3]
      %v387 = vpack.c.bf16 %v378, %v378
      %v388 = vld [vmem:[#allocation2] sm:$0xf]
      %v389 = vld [vmem:[#allocation2 + $0x4] sm:$0xf]
      %v390 = vld [vmem:[#allocation2 + $0x8] sm:$0xf]
      %v391 = vld [vmem:[#allocation2 + $0xc] sm:$0xf]
      %v396 = vunpack.c.l.b16 %v388
      %v397 = vunpack.c.l.b16 %v389
      %v398 = vunpack.c.l.b16 %v390
      %v399 = vunpack.c.l.b16 %v391
      %v400 = vpack.c.b16 %v397, %v396
      %v401 = vpack.c.b16 %v399, %v398
      %v405 = vsel %vm205, %v387, 0
      %407 = vmatpush.bf16.msra.mxu0 0
      %408 = vmatpush.bf16.msra.mxu0 0
      %409 = vmatpush.bf16.msra.mxu0 0
      %410 = vmatpush.bf16.msra.mxu0 0
      %411 = vmatpush.bf16.msra.mxu0 0
      %412 = vmatpush.bf16.msra.mxu0 0
      %413 = vmatpush.bf16.msra.mxu0 %v401
      %414 = vmatpush.bf16.msra.mxu0 %v400
      %415 = vmatmul.bf16.gmra.mxu0 %v405
      %v416 = vpop.f32.mrf.mxu0
      %v417 = vadd.f32 0.0, %v416
      %v418 = vpop.f32.mrf.mxu0
      %419 = vdwg.mxu0
      %v420 = vadd.f32 %v383, %v417
      %v421 = vld [vmem:[%s223] sm:$0xf]
      %v422 = vld [vmem:[%s223 + $0x4] sm:$0xf]
      %v423 = vld [vmem:[%s223 + $0x8] sm:$0xf]
      %v424 = vld [vmem:[%s223 + $0xc] sm:$0xf]
      %v429 = vunpack.c.l.b16 %v421
      %v430 = vunpack.c.l.b16 %v422
      %v431 = vunpack.c.l.b16 %v423
      %v432 = vunpack.c.l.b16 %v424
      %v433 = vpack.c.b16 %v430, %v429
      %v434 = vpack.c.b16 %v432, %v431
      %437 = vmatpush.bf16.msra.mxu0 0
      %438 = vmatpush.bf16.msra.mxu0 0
      %439 = vmatpush.bf16.msra.mxu0 0
      %440 = vmatpush.bf16.msra.mxu0 0
      %441 = vmatpush.bf16.msra.mxu0 0
      %442 = vmatpush.bf16.msra.mxu0 0
      %443 = vmatpush.bf16.msra.mxu0 %v434
      %444 = vmatpush.bf16.msra.mxu0 %v433
      %445 = vmatmul.bf16.gmra.mxu0 %v405
      %v446 = vpop.f32.mrf.mxu0
      %v447 = vadd.f32 0.0, %v446
      %v448 = vpop.f32.mrf.mxu0
      %449 = vdwg.mxu0
      %v450 = vadd.f32 %v384, %v447
      %v451 = vld [vmem:[%s254] sm:$0xf]
      %v452 = vld [vmem:[%s254 + $0x4] sm:$0xf]
      %v453 = vld [vmem:[%s254 + $0x8] sm:$0xf]
      %v454 = vld [vmem:[%s254 + $0xc] sm:$0xf]
      %v459 = vunpack.c.l.b16 %v451
      %v460 = vunpack.c.l.b16 %v452
      %v461 = vunpack.c.l.b16 %v453
      %v462 = vunpack.c.l.b16 %v454
      %v463 = vpack.c.b16 %v460, %v459
      %v464 = vpack.c.b16 %v462, %v461
      %467 = vmatpush.bf16.msra.mxu0 0
      %468 = vmatpush.bf16.msra.mxu0 0
      %469 = vmatpush.bf16.msra.mxu0 0
      %470 = vmatpush.bf16.msra.mxu0 0
      %471 = vmatpush.bf16.msra.mxu0 0
      %472 = vmatpush.bf16.msra.mxu0 0
      %473 = vmatpush.bf16.msra.mxu0 %v464
      %474 = vmatpush.bf16.msra.mxu0 %v463
      %475 = vmatmul.bf16.gmra.mxu0 %v405
      %v476 = vpop.f32.mrf.mxu0
      %v477 = vadd.f32 0.0, %v476
      %v478 = vpop.f32.mrf.mxu0
      %479 = vdwg.mxu0
      %v480 = vadd.f32 %v385, %v477
      %v481 = vld [vmem:[%s285] sm:$0xf]
      %v482 = vld [vmem:[%s285 + $0x4] sm:$0xf]
      %v483 = vld [vmem:[%s285 + $0x8] sm:$0xf]
      %v484 = vld [vmem:[%s285 + $0xc] sm:$0xf]
      %v489 = vunpack.c.l.b16 %v481
      %v490 = vunpack.c.l.b16 %v482
      %v491 = vunpack.c.l.b16 %v483
      %v492 = vunpack.c.l.b16 %v484
      %v493 = vpack.c.b16 %v490, %v489
      %v494 = vpack.c.b16 %v492, %v491
      %497 = vmatpush.bf16.msra.mxu0 0
      %498 = vmatpush.bf16.msra.mxu0 0
      %499 = vmatpush.bf16.msra.mxu0 0
      %500 = vmatpush.bf16.msra.mxu0 0
      %501 = vmatpush.bf16.msra.mxu0 0
      %502 = vmatpush.bf16.msra.mxu0 0
      %503 = vmatpush.bf16.msra.mxu0 %v494
      %504 = vmatpush.bf16.msra.mxu0 %v493
      %505 = vmatmul.bf16.gmra.mxu0 %v405
      %v506 = vpop.f32.mrf.mxu0
      %v507 = vadd.f32 0.0, %v506
      %v508 = vpop.f32.mrf.mxu0
      %509 = vdwg.mxu0
      %v510 = vadd.f32 %v386, %v507
      %v511 = vxor.u32 %v420, 2147483648
      %v512 = vmul.f32 %v511, 1.442695
      %v513 = vpow.pop %v512
      %v514 = vadd.f32 %v513, 1.0
      %v515 = vrcp.pop %v514
      %v516 = vmul.f32 %v514, %v515
      %v517 = vsub.f32 1.0, %v516
      %v518 = vmul.f32 %v515, %v517
      %v519 = vadd.f32 %v515, %v518
      %vm520 = vweird.f32 %v514
      %vm521 = vweird.f32 %v515
      %vm522 = vmor %vm520, %vm521
      %v523 = vsel %vm522, %v515, %v519
      %v524 = vand.u32 2147483647, %v514
      %vm525 = vcmp.eq.f32.partialorder %v524, 8.507059e+37
      %v526 = vand.u32 %v514, 2147483648
      %v527 = vor.u32 1.1754944e-38, %v526
      %v528 = vsel %vm525, %v527, %v523
      %v529 = vmul.f32 1.0, %v528
      %v530 = vxor.u32 %v450, 2147483648
      %v531 = vmul.f32 %v530, 1.442695
      %v532 = vpow.pop %v531
      %v533 = vadd.f32 %v532, 1.0
      %v534 = vrcp.pop %v533
      %v535 = vmul.f32 %v533, %v534
      %v536 = vsub.f32 1.0, %v535
      %v537 = vmul.f32 %v534, %v536
      %v538 = vadd.f32 %v534, %v537
      %vm539 = vweird.f32 %v533
      %vm540 = vweird.f32 %v534
      %vm541 = vmor %vm539, %vm540
      %v542 = vsel %vm541, %v534, %v538
      %v543 = vand.u32 2147483647, %v533
      %vm544 = vcmp.eq.f32.partialorder %v543, 8.507059e+37
      %v545 = vand.u32 %v533, 2147483648
      %v546 = vor.u32 1.1754944e-38, %v545
      %v547 = vsel %vm544, %v546, %v542
      %v548 = vmul.f32 1.0, %v547
      %v549 = vtanh.pop %v480
      %v550 = vxor.u32 %v510, 2147483648
      %v551 = vmul.f32 %v550, 1.442695
      %v552 = vpow.pop %v551
      %v553 = vadd.f32 %v552, 1.0
      %v554 = vrcp.pop %v553
      %v555 = vmul.f32 %v553, %v554
      %v556 = vsub.f32 1.0, %v555
      %v557 = vmul.f32 %v554, %v556
      %v558 = vadd.f32 %v554, %v557
      %vm559 = vweird.f32 %v553
      %vm560 = vweird.f32 %v554
      %vm561 = vmor %vm559, %vm560
      %v562 = vsel %vm561, %v554, %v558
      %v563 = vand.u32 2147483647, %v553
      %vm564 = vcmp.eq.f32.partialorder %v563, 8.507059e+37
      %v565 = vand.u32 %v553, 2147483648
      %v566 = vor.u32 1.1754944e-38, %v565
      %v567 = vsel %vm564, %v566, %v562
      %v568 = vmul.f32 1.0, %v567
      %v569 = vmul.f32 %v548, %v376
      %v570 = vmul.f32 %v529, %v549
      %v571 = vadd.f32 %v569, %v570
      %v572 = vtanh.pop %v571
      %v573 = vmul.f32 %v568, %v572
      %s574 = scalar_lea.vmem %s133, 4
      %575 = vst.msk [vmem:[%s574] sm:$0x3] %vm380, %v573
      %s576 = scalar_lea.vmem %s125, 8
      %v577 = vld [vmem:[%s576] sm:$0x3]
      %v578 = vld [vmem:[%s576 + $0x2] sm:$0x3]
      %v579 = vld [vmem:[%s576 + $0x4] sm:$0x3]
      %v580 = vld [vmem:[%s576 + $0x6] sm:$0x3]
      %v581 = vpack.c.bf16 %v573, %v573
      %v582 = vld [vmem:[#allocation2] sm:$0xf]
      %v583 = vld [vmem:[#allocation2 + $0x4] sm:$0xf]
      %v584 = vld [vmem:[#allocation2 + $0x8] sm:$0xf]
      %v585 = vld [vmem:[#allocation2 + $0xc] sm:$0xf]
      %v590 = vunpack.c.l.b16 %v582
      %v591 = vunpack.c.l.b16 %v583
      %v592 = vunpack.c.l.b16 %v584
      %v593 = vunpack.c.l.b16 %v585
      %v594 = vpack.c.b16 %v591, %v590
      %v595 = vpack.c.b16 %v593, %v592
      %v599 = vsel %vm205, %v581, 0
      %601 = vmatpush.bf16.msra.mxu0 0
      %602 = vmatpush.bf16.msra.mxu0 0
      %603 = vmatpush.bf16.msra.mxu0 0
      %604 = vmatpush.bf16.msra.mxu0 0
      %605 = vmatpush.bf16.msra.mxu0 0
      %606 = vmatpush.bf16.msra.mxu0 0
      %607 = vmatpush.bf16.msra.mxu0 %v595
      %608 = vmatpush.bf16.msra.mxu0 %v594
      %609 = vmatmul.bf16.gmra.mxu0 %v599
      %v610 = vpop.f32.mrf.mxu0
      %v611 = vadd.f32 0.0, %v610
      %v612 = vpop.f32.mrf.mxu0
      %613 = vdwg.mxu0
      %v614 = vadd.f32 %v577, %v611
      %v615 = vld [vmem:[%s223] sm:$0xf]
      %v616 = vld [vmem:[%s223 + $0x4] sm:$0xf]
      %v617 = vld [vmem:[%s223 + $0x8] sm:$0xf]
      %v618 = vld [vmem:[%s223 + $0xc] sm:$0xf]
      %v623 = vunpack.c.l.b16 %v615
      %v624 = vunpack.c.l.b16 %v616
      %v625 = vunpack.c.l.b16 %v617
      %v626 = vunpack.c.l.b16 %v618
      %v627 = vpack.c.b16 %v624, %v623
      %v628 = vpack.c.b16 %v626, %v625
      %631 = vmatpush.bf16.msra.mxu0 0
      %632 = vmatpush.bf16.msra.mxu0 0
      %633 = vmatpush.bf16.msra.mxu0 0
      %634 = vmatpush.bf16.msra.mxu0 0
      %635 = vmatpush.bf16.msra.mxu0 0
      %636 = vmatpush.bf16.msra.mxu0 0
      %637 = vmatpush.bf16.msra.mxu0 %v628
      %638 = vmatpush.bf16.msra.mxu0 %v627
      %639 = vmatmul.bf16.gmra.mxu0 %v599
      %v640 = vpop.f32.mrf.mxu0
      %v641 = vadd.f32 0.0, %v640
      %v642 = vpop.f32.mrf.mxu0
      %643 = vdwg.mxu0
      %v644 = vadd.f32 %v578, %v641
      %v645 = vld [vmem:[%s254] sm:$0xf]
      %v646 = vld [vmem:[%s254 + $0x4] sm:$0xf]
      %v647 = vld [vmem:[%s254 + $0x8] sm:$0xf]
      %v648 = vld [vmem:[%s254 + $0xc] sm:$0xf]
      %v653 = vunpack.c.l.b16 %v645
      %v654 = vunpack.c.l.b16 %v646
      %v655 = vunpack.c.l.b16 %v647
      %v656 = vunpack.c.l.b16 %v648
      %v657 = vpack.c.b16 %v654, %v653
      %v658 = vpack.c.b16 %v656, %v655
      %661 = vmatpush.bf16.msra.mxu0 0
      %662 = vmatpush.bf16.msra.mxu0 0
      %663 = vmatpush.bf16.msra.mxu0 0
      %664 = vmatpush.bf16.msra.mxu0 0
      %665 = vmatpush.bf16.msra.mxu0 0
      %666 = vmatpush.bf16.msra.mxu0 0
      %667 = vmatpush.bf16.msra.mxu0 %v658
      %668 = vmatpush.bf16.msra.mxu0 %v657
      %669 = vmatmul.bf16.gmra.mxu0 %v599
      %v670 = vpop.f32.mrf.mxu0
      %v671 = vadd.f32 0.0, %v670
      %v672 = vpop.f32.mrf.mxu0
      %673 = vdwg.mxu0
      %v674 = vadd.f32 %v579, %v671
      %v675 = vld [vmem:[%s285] sm:$0xf]
      %v676 = vld [vmem:[%s285 + $0x4] sm:$0xf]
      %v677 = vld [vmem:[%s285 + $0x8] sm:$0xf]
      %v678 = vld [vmem:[%s285 + $0xc] sm:$0xf]
      %v683 = vunpack.c.l.b16 %v675
      %v684 = vunpack.c.l.b16 %v676
      %v685 = vunpack.c.l.b16 %v677
      %v686 = vunpack.c.l.b16 %v678
      %v687 = vpack.c.b16 %v684, %v683
      %v688 = vpack.c.b16 %v686, %v685
      %691 = vmatpush.bf16.msra.mxu0 0
      %692 = vmatpush.bf16.msra.mxu0 0
      %693 = vmatpush.bf16.msra.mxu0 0
      %694 = vmatpush.bf16.msra.mxu0 0
      %695 = vmatpush.bf16.msra.mxu0 0
      %696 = vmatpush.bf16.msra.mxu0 0
      %697 = vmatpush.bf16.msra.mxu0 %v688
      %698 = vmatpush.bf16.msra.mxu0 %v687
      %699 = vmatmul.bf16.gmra.mxu0 %v599
      %v700 = vpop.f32.mrf.mxu0
      %v701 = vadd.f32 0.0, %v700
      %v702 = vpop.f32.mrf.mxu0
      %703 = vdwg.mxu0
      %v704 = vadd.f32 %v580, %v701
      %v705 = vxor.u32 %v614, 2147483648
      %v706 = vmul.f32 %v705, 1.442695
      %v707 = vpow.pop %v706
      %v708 = vadd.f32 %v707, 1.0
      %v709 = vrcp.pop %v708
      %v710 = vmul.f32 %v708, %v709
      %v711 = vsub.f32 1.0, %v710
      %v712 = vmul.f32 %v709, %v711
      %v713 = vadd.f32 %v709, %v712
      %vm714 = vweird.f32 %v708
      %vm715 = vweird.f32 %v709
      %vm716 = vmor %vm714, %vm715
      %v717 = vsel %vm716, %v709, %v713
      %v718 = vand.u32 2147483647, %v708
      %vm719 = vcmp.eq.f32.partialorder %v718, 8.507059e+37
      %v720 = vand.u32 %v708, 2147483648
      %v721 = vor.u32 1.1754944e-38, %v720
      %v722 = vsel %vm719, %v721, %v717
      %v723 = vmul.f32 1.0, %v722
      %v724 = vxor.u32 %v644, 2147483648
      %v725 = vmul.f32 %v724, 1.442695
      %v726 = vpow.pop %v725
      %v727 = vadd.f32 %v726, 1.0
      %v728 = vrcp.pop %v727
      %v729 = vmul.f32 %v727, %v728
      %v730 = vsub.f32 1.0, %v729
      %v731 = vmul.f32 %v728, %v730
      %v732 = vadd.f32 %v728, %v731
      %vm733 = vweird.f32 %v727
      %vm734 = vweird.f32 %v728
      %vm735 = vmor %vm733, %vm734
      %v736 = vsel %vm735, %v728, %v732
      %v737 = vand.u32 2147483647, %v727
      %vm738 = vcmp.eq.f32.partialorder %v737, 8.507059e+37
      %v739 = vand.u32 %v727, 2147483648
      %v740 = vor.u32 1.1754944e-38, %v739
      %v741 = vsel %vm738, %v740, %v736
      %v742 = vmul.f32 1.0, %v741
      %v743 = vtanh.pop %v674
      %v744 = vxor.u32 %v704, 2147483648
      %v745 = vmul.f32 %v744, 1.442695
      %v746 = vpow.pop %v745
      %v747 = vadd.f32 %v746, 1.0
      %v748 = vrcp.pop %v747
      %v749 = vmul.f32 %v747, %v748
      %v750 = vsub.f32 1.0, %v749
      %v751 = vmul.f32 %v748, %v750
      %v752 = vadd.f32 %v748, %v751
      %vm753 = vweird.f32 %v747
      %vm754 = vweird.f32 %v748
      %vm755 = vmor %vm753, %vm754
      %v756 = vsel %vm755, %v748, %v752
      %v757 = vand.u32 2147483647, %v747
      %vm758 = vcmp.eq.f32.partialorder %v757, 8.507059e+37
      %v759 = vand.u32 %v747, 2147483648
      %v760 = vor.u32 1.1754944e-38, %v759
      %v761 = vsel %vm758, %v760, %v756
      %v762 = vmul.f32 1.0, %v761
      %v763 = vmul.f32 %v742, %v571
      %v764 = vmul.f32 %v723, %v743
      %v765 = vadd.f32 %v763, %v764
      %v766 = vtanh.pop %v765
      %v767 = vmul.f32 %v762, %v766
      %s768 = scalar_lea.vmem %s133, 2
      %769 = vst.msk [vmem:[%s768] sm:$0x3] %vm380, %v767
      %v770 = vld [vmem:[%s125] sm:$0x3]
      %v771 = vld [vmem:[%s125 + $0x2] sm:$0x3]
      %v772 = vld [vmem:[%s125 + $0x4] sm:$0x3]
      %v773 = vld [vmem:[%s125 + $0x6] sm:$0x3]
      %v774 = vpack.c.bf16 %v767, %v767
      %v775 = vld [vmem:[#allocation2] sm:$0xf]
      %v776 = vld [vmem:[#allocation2 + $0x4] sm:$0xf]
      %v777 = vld [vmem:[#allocation2 + $0x8] sm:$0xf]
      %v778 = vld [vmem:[#allocation2 + $0xc] sm:$0xf]
      %v783 = vunpack.c.l.b16 %v775
      %v784 = vunpack.c.l.b16 %v776
      %v785 = vunpack.c.l.b16 %v777
      %v786 = vunpack.c.l.b16 %v778
      %v787 = vpack.c.b16 %v784, %v783
      %v788 = vpack.c.b16 %v786, %v785
      %v792 = vsel %vm205, %v774, 0
      %794 = vmatpush.bf16.msra.mxu0 0
      %795 = vmatpush.bf16.msra.mxu0 0
      %796 = vmatpush.bf16.msra.mxu0 0
      %797 = vmatpush.bf16.msra.mxu0 0
      %798 = vmatpush.bf16.msra.mxu0 0
      %799 = vmatpush.bf16.msra.mxu0 0
      %800 = vmatpush.bf16.msra.mxu0 %v788
      %801 = vmatpush.bf16.msra.mxu0 %v787
      %802 = vmatmul.bf16.gmra.mxu0 %v792
      %v803 = vpop.f32.mrf.mxu0
      %v804 = vadd.f32 0.0, %v803
      %v805 = vpop.f32.mrf.mxu0
      %806 = vdwg.mxu0
      %v807 = vadd.f32 %v770, %v804
      %v808 = vld [vmem:[%s223] sm:$0xf]
      %v809 = vld [vmem:[%s223 + $0x4] sm:$0xf]
      %v810 = vld [vmem:[%s223 + $0x8] sm:$0xf]
      %v811 = vld [vmem:[%s223 + $0xc] sm:$0xf]
      %v816 = vunpack.c.l.b16 %v808
      %v817 = vunpack.c.l.b16 %v809
      %v818 = vunpack.c.l.b16 %v810
      %v819 = vunpack.c.l.b16 %v811
      %v820 = vpack.c.b16 %v817, %v816
      %v821 = vpack.c.b16 %v819, %v818
      %824 = vmatpush.bf16.msra.mxu0 0
      %825 = vmatpush.bf16.msra.mxu0 0
      %826 = vmatpush.bf16.msra.mxu0 0
      %827 = vmatpush.bf16.msra.mxu0 0
      %828 = vmatpush.bf16.msra.mxu0 0
      %829 = vmatpush.bf16.msra.mxu0 0
      %830 = vmatpush.bf16.msra.mxu0 %v821
      %831 = vmatpush.bf16.msra.mxu0 %v820
      %832 = vmatmul.bf16.gmra.mxu0 %v792
      %v833 = vpop.f32.mrf.mxu0
      %v834 = vadd.f32 0.0, %v833
      %v835 = vpop.f32.mrf.mxu0
      %836 = vdwg.mxu0
      %v837 = vadd.f32 %v771, %v834
      %v838 = vld [vmem:[%s254] sm:$0xf]
      %v839 = vld [vmem:[%s254 + $0x4] sm:$0xf]
      %v840 = vld [vmem:[%s254 + $0x8] sm:$0xf]
      %v841 = vld [vmem:[%s254 + $0xc] sm:$0xf]
      %v846 = vunpack.c.l.b16 %v838
      %v847 = vunpack.c.l.b16 %v839
      %v848 = vunpack.c.l.b16 %v840
      %v849 = vunpack.c.l.b16 %v841
      %v850 = vpack.c.b16 %v847, %v846
      %v851 = vpack.c.b16 %v849, %v848
      %854 = vmatpush.bf16.msra.mxu0 0
      %855 = vmatpush.bf16.msra.mxu0 0
      %856 = vmatpush.bf16.msra.mxu0 0
      %857 = vmatpush.bf16.msra.mxu0 0
      %858 = vmatpush.bf16.msra.mxu0 0
      %859 = vmatpush.bf16.msra.mxu0 0
      %860 = vmatpush.bf16.msra.mxu0 %v851
      %861 = vmatpush.bf16.msra.mxu0 %v850
      %862 = vmatmul.bf16.gmra.mxu0 %v792
      %v863 = vpop.f32.mrf.mxu0
      %v864 = vadd.f32 0.0, %v863
      %v865 = vpop.f32.mrf.mxu0
      %866 = vdwg.mxu0
      %v867 = vadd.f32 %v772, %v864
      %v868 = vld [vmem:[%s285] sm:$0xf]
      %v869 = vld [vmem:[%s285 + $0x4] sm:$0xf]
      %v870 = vld [vmem:[%s285 + $0x8] sm:$0xf]
      %v871 = vld [vmem:[%s285 + $0xc] sm:$0xf]
      %v876 = vunpack.c.l.b16 %v868
      %v877 = vunpack.c.l.b16 %v869
      %v878 = vunpack.c.l.b16 %v870
      %v879 = vunpack.c.l.b16 %v871
      %v880 = vpack.c.b16 %v877, %v876
      %v881 = vpack.c.b16 %v879, %v878
      %884 = vmatpush.bf16.msra.mxu0 0
      %885 = vmatpush.bf16.msra.mxu0 0
      %886 = vmatpush.bf16.msra.mxu0 0
      %887 = vmatpush.bf16.msra.mxu0 0
      %888 = vmatpush.bf16.msra.mxu0 0
      %889 = vmatpush.bf16.msra.mxu0 0
      %890 = vmatpush.bf16.msra.mxu0 %v881
      %891 = vmatpush.bf16.msra.mxu0 %v880
      %892 = vmatmul.bf16.gmra.mxu0 %v792
      %v893 = vpop.f32.mrf.mxu0
      %v894 = vadd.f32 0.0, %v893
      %v895 = vpop.f32.mrf.mxu0
      %896 = vdwg.mxu0
      %v897 = vadd.f32 %v773, %v894
      %v898 = vxor.u32 %v807, 2147483648
      %v899 = vmul.f32 %v898, 1.442695
      %v900 = vpow.pop %v899
      %v901 = vadd.f32 %v900, 1.0
      %v902 = vrcp.pop %v901
      %v903 = vmul.f32 %v901, %v902
      %v904 = vsub.f32 1.0, %v903
      %v905 = vmul.f32 %v902, %v904
      %v906 = vadd.f32 %v902, %v905
      %vm907 = vweird.f32 %v901
      %vm908 = vweird.f32 %v902
      %vm909 = vmor %vm907, %vm908
      %v910 = vsel %vm909, %v902, %v906
      %v911 = vand.u32 2147483647, %v901
      %vm912 = vcmp.eq.f32.partialorder %v911, 8.507059e+37
      %v913 = vand.u32 %v901, 2147483648
      %v914 = vor.u32 1.1754944e-38, %v913
      %v915 = vsel %vm912, %v914, %v910
      %v916 = vmul.f32 1.0, %v915
      %v917 = vxor.u32 %v837, 2147483648
      %v918 = vmul.f32 %v917, 1.442695
      %v919 = vpow.pop %v918
      %v920 = vadd.f32 %v919, 1.0
      %v921 = vrcp.pop %v920
      %v922 = vmul.f32 %v920, %v921
      %v923 = vsub.f32 1.0, %v922
      %v924 = vmul.f32 %v921, %v923
      %v925 = vadd.f32 %v921, %v924
      %vm926 = vweird.f32 %v920
      %vm927 = vweird.f32 %v921
      %vm928 = vmor %vm926, %vm927
      %v929 = vsel %vm928, %v921, %v925
      %v930 = vand.u32 2147483647, %v920
      %vm931 = vcmp.eq.f32.partialorder %v930, 8.507059e+37
      %v932 = vand.u32 %v920, 2147483648
      %v933 = vor.u32 1.1754944e-38, %v932
      %v934 = vsel %vm931, %v933, %v929
      %v935 = vmul.f32 1.0, %v934
      %v936 = vtanh.pop %v867
      %v937 = vxor.u32 %v897, 2147483648
      %v938 = vmul.f32 %v937, 1.442695
      %v939 = vpow.pop %v938
      %v940 = vadd.f32 %v939, 1.0
      %v941 = vrcp.pop %v940
      %v942 = vmul.f32 %v940, %v941
      %v943 = vsub.f32 1.0, %v942
      %v944 = vmul.f32 %v941, %v943
      %v945 = vadd.f32 %v941, %v944
      %vm946 = vweird.f32 %v940
      %vm947 = vweird.f32 %v941
      %vm948 = vmor %vm946, %vm947
      %v949 = vsel %vm948, %v941, %v945
      %v950 = vand.u32 2147483647, %v940
      %vm951 = vcmp.eq.f32.partialorder %v950, 8.507059e+37
      %v952 = vand.u32 %v940, 2147483648
      %v953 = vor.u32 1.1754944e-38, %v952
      %v954 = vsel %vm951, %v953, %v949
      %v955 = vmul.f32 1.0, %v954
      %v956 = vmul.f32 %v935, %v765
      %v957 = vmul.f32 %v916, %v936
      %v958 = vadd.f32 %v956, %v957
      %v959 = vtanh.pop %v958
      %v960 = vmul.f32 %v955, %v959
      %961 = vst.msk [vmem:[%s133] sm:$0x3] %vm380, %v960
      %962 = vst.msk [vmem:[#allocation3] sm:$0x3] %vm380, %v960
      %963 = vst.msk [vmem:[#allocation4] sm:$0x3] %vm380, %v958
      %s964 = ssub.s32 2, %s13
      %s965 = smul.u32 4, %s964
      %p966 = scmp.lt.s32.totalorder %s965, 11
      %s967 = scalar_select %p966, %s965, 11
      %s968 = smul.addr %s967, 2
      %s969 = scalar_lea.vmem %s2, %s968
      // Predicated region
      $region48: #{backward_lstm_forward.2} parent=23 // pred_check
        %p970 = pneg %p61
      $region49: #{backward_lstm_forward.2} parent=23 // pred_check_branch
        %972 = sbr.rel (%p970) target = $region51
      $region50: #{backward_lstm_forward.2} parent=23 // pred_region
        %s973 = ssub.s32 2, %s13
        %s974 = smul.u32 4, %s973
      $region51: #{backward_lstm_forward.2} parent=23 // pred_fallthru
        _
    $region24: #{backward_lstm_forward.2} parent=5 // pred_fallthru
      _
    %p975 = scmp.le.s32.totalorder 2, %s8
    // Predicated region
    $region52: #{backward_lstm_forward.2} parent=5 // pred_check
      %p976 = pneg %p975
    $region53: #{backward_lstm_forward.2} parent=5 // pred_check_branch
      %978 = sbr.rel (%p976) target = $region55
    $region54: #{backward_lstm_forward.2} parent=5 // pred_region
      %s979 = ssub.s32 %s8, 2
      // Predicated region
      $region56: #{backward_lstm_forward.2} parent=54 // pred_check
        %p980 = pneg %p67
      $region57: #{backward_lstm_forward.2} parent=54 // pred_check_branch
        %982 = sbr.rel (%p980) target = $region59
      $region58: #{backward_lstm_forward.2} parent=54 // pred_region
        %s983 = ssub.s32 2, %s14
        %s984 = smul.u32 4, %s983
        %p985 = scmp.lt.s32.totalorder %s984, 11
        %s986 = scalar_select %p985, %s984, 11
        %s987 = smul.addr %s986, 2
        %s988 = scalar_lea.vmem %s2, %s987
      $region59: #{backward_lstm_forward.2} parent=54 // pred_fallthru
        _
    $region55: #{backward_lstm_forward.2} parent=5 // pred_fallthru
      _
  $region6: #{backward_lstm_forward.2} parent=0 // loop_footer
    %s12 = sadd.s32 1, %s8
  $region7: #{backward_lstm_forward.2} parent=0 // loop_footer_branch
    %7 = sbr.rel target = $region3
  $region8: #{backward_lstm_forward.2} parent=0 // loop_exit
    _
  %989 = vsyncmov [#allocation5]
  %s990 = vpop.sfrf %989
  %p991 = scmp.eq.s32.totalorder %s990, 0
  %p992 = pneg %p991
  %994 = shalt.err (%p992)

</llo_original>
